<compile_context>
chip_gen: v5e
topology: v5e:2x2
jax: 0.10.0
libtpu: 0.0.40
codegen_flags: <defaults>
</compile_context>

<pallas_src>
import functools

import jax
import jax.numpy as jnp
from jax.experimental import pallas as pl
from jax.experimental.pallas import tpu as pltpu

LANE = 128
_VMEM_LIMIT = 32 * 1024 * 1024  # explicit, safe on v5e/v6e/v7x for these tiles


# ----------------------------------------------------------------------------
# Small helpers (host-side padding / shaping)
# ----------------------------------------------------------------------------
def _round_up(x, m):
    return ((x + m - 1) // m) * m


def _pad2(x, rows, cols, dtype=None):
    """Zero-pad a 2-D array to (rows, cols), optionally casting."""
    dtype = x.dtype if dtype is None else dtype
    return jnp.zeros((rows, cols), dtype).at[: x.shape[0], : x.shape[1]].set(
        x.astype(dtype))


def _stack_sage_weights(w_l, w_r, din_pad, dout_pad):
    """[W_l; W_r] laid out so rows [0:din_pad) match `agg` lanes and
    rows [din_pad:2*din_pad) match `x_self` lanes after the in-kernel concat."""
    din, dout = w_l.shape
    w = jnp.zeros((2 * din_pad, dout_pad), jnp.bfloat16)
    w = w.at[:din, :dout].set(w_l.astype(jnp.bfloat16))
    w = w.at[din_pad:din_pad + din, :dout].set(w_r.astype(jnp.bfloat16))
    return w


def _sage_tiles(n):
    """Row tile TM and contraction (neighbor) tile TK.  Sized so the
    double-buffered bf16 A/X tiles + f32 accumulator stay far below a 32 MiB
    scoped-VMEM budget on every chip generation."""
    tm, tk = 256, 512
    n_pad = _round_up(n, max(tm, tk))
    return n_pad, tm, tk


# ----------------------------------------------------------------------------
# Pallas kernels
# ----------------------------------------------------------------------------
def _sage_layer_kernel(a_ref, xk_ref, xi_ref, w_ref, b_ref, o_ref, acc_ref, *,
                       apply_relu):
    """One SAGEConv layer (aggr='mean'), tiled over (node rows, neighbor K):
         acc += A_tile @ X_k                    (bf16 MXU, f32 accumulate)
         out  = concat([acc, X_i]) @ [W_l;W_r] + b   [+ ReLU]   (on last K step)
    """
    k = pl.program_id(1)

    @pl.when(k == 0)
    def _():
        acc_ref[...] = jnp.zeros_like(acc_ref)

    acc_ref[...] += jnp.dot(a_ref[...], xk_ref[...],
                            preferred_element_type=jnp.float32)

    @pl.when(k == pl.num_programs(1) - 1)
    def _():
        z = jnp.concatenate([acc_ref[...].astype(jnp.bfloat16), xi_ref[...]],
                            axis=-1)
        out = jnp.dot(z, w_ref[...], preferred_element_type=jnp.float32)
        out = out + b_ref[...]          # (1, Dout) broadcasts over rows (f32 VPU)
        if apply_relu:
            out = jnp.maximum(out, 0.0)
        o_ref[...] = out.astype(o_ref.dtype)


def _decoder_kernel(zs_ref, zd_ref, w1_ref, b1_ref, w2_ref, b2_ref, o_ref):
    """GraphSAGEDecoder: sigmoid(lin2(relu(lin1(cat(z_src, z_dst))))).
    Dropout(p=0.2) is identity in eval mode.  Final projection is padded to
    128 lanes; the real score lives in column 0 (sliced in the wrapper)."""
    z = jnp.concatenate([zs_ref[...], zd_ref[...]], axis=-1)
    h = jnp.dot(z, w1_ref[...], preferred_element_type=jnp.float32) + b1_ref[...]
    h = jnp.maximum(h, 0.0)
    s = jnp.dot(h.astype(jnp.bfloat16), w2_ref[...],
                preferred_element_type=jnp.float32) + b2_ref[...]
    o_ref[...] = jax.nn.sigmoid(s).astype(o_ref.dtype)


# ----------------------------------------------------------------------------
# Pallas wrappers
# ----------------------------------------------------------------------------
def sage_layer(a_bf16, x_bf16, w_stacked, b_pad, *, apply_relu, tm, tk):
    """a_bf16: (Np, Np) bf16; x_bf16: (Np, Din_pad) bf16;
    w_stacked: (2*Din_pad, Dout_pad) bf16; b_pad: (1, Dout_pad) f32."""
    n_pad = a_bf16.shape[0]
    d_in = x_bf16.shape[1]
    d_out = w_stacked.shape[1]
    grid = (n_pad // tm, n_pad // tk)
    return pl.pallas_call(
        functools.partial(_sage_layer_kernel, apply_relu=apply_relu),
        out_shape=jax.ShapeDtypeStruct((n_pad, d_out), jnp.float32),
        grid_spec=pltpu.PrefetchScalarGridSpec(
            num_scalar_prefetch=0,
            grid=grid,
            in_specs=[
                pl.BlockSpec((tm, tk), lambda i, k: (i, k)),          # A tile
                pl.BlockSpec((tk, d_in), lambda i, k: (k, 0)),        # X (neighbors)
                pl.BlockSpec((tm, d_in), lambda i, k: (i, 0)),        # X (self rows)
                pl.BlockSpec((2 * d_in, d_out), lambda i, k: (0, 0)),  # [W_l; W_r]
                pl.BlockSpec((1, d_out), lambda i, k: (0, 0)),         # bias
            ],
            out_specs=pl.BlockSpec((tm, d_out), lambda i, k: (i, 0)),
            scratch_shapes=[pltpu.VMEM((tm, d_in), jnp.float32)],
        ),
        compiler_params=pltpu.CompilerParams(
            dimension_semantics=("parallel", "arbitrary"),
            vmem_limit_bytes=_VMEM_LIMIT,
        ),
    )(a_bf16, x_bf16, x_bf16, w_stacked, b_pad)


def decoder_forward(z_src, z_dst, params, embedding_dim, *, te=128):
    """Link-prediction decoder, tiled over edges ('parallel' grid axis)."""
    e = z_src.shape[0]
    emb = embedding_dim
    d_pad = _round_up(emb, LANE)
    e_pad = _round_up(e, te)

    zs = _pad2(z_src, e_pad, d_pad, jnp.bfloat16)
    zd = _pad2(z_dst, e_pad, d_pad, jnp.bfloat16)

    w1, b1 = params["dec_w1"], params["dec_b1"]
    w2, b2 = params["dec_w2"], params["dec_b2"]
    # lin1 weight, re-laid-out to match [z_src_pad | z_dst_pad] lanes.
    w1p = jnp.zeros((2 * d_pad, d_pad), jnp.bfloat16)
    w1p = w1p.at[:emb, :emb].set(w1[:emb].astype(jnp.bfloat16))
    w1p = w1p.at[d_pad:d_pad + emb, :emb].set(w1[emb:].astype(jnp.bfloat16))
    b1p = _pad2(b1.reshape(1, -1), 1, d_pad, jnp.float32)
    # lin2 padded to a lane-dense (d_pad, 128) projection; score in column 0.
    w2p = _pad2(w2, d_pad, LANE, jnp.bfloat16)
    b2p = _pad2(b2.reshape(1, -1), 1, LANE, jnp.float32)

    out = pl.pallas_call(
        _decoder_kernel,
        out_shape=jax.ShapeDtypeStruct((e_pad, LANE), jnp.float32),
        grid_spec=pltpu.PrefetchScalarGridSpec(
            num_scalar_prefetch=0,
            grid=(e_pad // te,),
            in_specs=[
                pl.BlockSpec((te, d_pad), lambda i: (i, 0)),
                pl.BlockSpec((te, d_pad), lambda i: (i, 0)),
                pl.BlockSpec((2 * d_pad, d_pad), lambda i: (0, 0)),
                pl.BlockSpec((1, d_pad), lambda i: (0, 0)),
                pl.BlockSpec((d_pad, LANE), lambda i: (0, 0)),
                pl.BlockSpec((1, LANE), lambda i: (0, 0)),
            ],
            out_specs=pl.BlockSpec((te, LANE), lambda i: (i, 0)),
        ),
        compiler_params=pltpu.CompilerParams(
            dimension_semantics=("parallel",),
            vmem_limit_bytes=_VMEM_LIMIT,
        ),
    )(zs, zd, w1p, b1p, w2p, b2p)
    return out[:e, :1]


# ----------------------------------------------------------------------------
# Glue (plain JAX): adjacency construction, parameter init, model wrapper
# ----------------------------------------------------------------------------
def build_mean_adj(edge_index, num_nodes):
    """Dense row-normalized adjacency: A[i, j] = count(j->i) / in_degree(i).
    Built ONCE per graph and reused across layers / forward calls."""
    src, dst = edge_index[0], edge_index[1]
    a = jnp.zeros((num_nodes, num_nodes), jnp.float32).at[dst, src].add(1.0)
    deg = jnp.clip(jnp.sum(a, axis=1, keepdims=True), 1.0, None)
    return a / deg


def init_params(key, input_dim, embedding_dim, user_feature_dim):
    ks = jax.random.split(key, 12)
    s = 0.1

    def w(k, shape):
        return (s * jax.random.normal(k, shape)).astype(jnp.float32)

    params = {
        # encoder layer 0: SAGEConv(input_dim -> embedding_dim)
        "l0_wl": w(ks[0], (input_dim, embedding_dim)),
        "l0_wr": w(ks[1], (input_dim, embedding_dim)),
        "l0_b":  jnp.zeros((embedding_dim,), jnp.float32),
        # encoder layer 1: SAGEConv(embedding_dim -> embedding_dim)
        "l1_wl": w(ks[2], (embedding_dim, embedding_dim)),
        "l1_wr": w(ks[3], (embedding_dim, embedding_dim)),
        "l1_b":  jnp.zeros((embedding_dim,), jnp.float32),
        # decoder: Linear(2*emb -> emb), Linear(emb -> 1)
        "dec_w1": w(ks[4], (2 * embedding_dim, embedding_dim)),
        "dec_b1": jnp.zeros((embedding_dim,), jnp.float32),
        "dec_w2": w(ks[5], (embedding_dim, 1)),
        "dec_b2": jnp.zeros((1,), jnp.float32),
        # TODO(synk): user_feature_projection (Linear+ReLU+LayerNorm) is only
        # used on the inductive_recommend path, not in forward(); parameters
        # kept for shape fidelity but not exercised here.
        "proj_w": w(ks[6], (user_feature_dim, embedding_dim)),
        "proj_b": jnp.zeros((embedding_dim,), jnp.float32),
    }
    return params


def graphsage_forward(params, x, a_dense, node_type, embedding_dim):
    """GraphSAGEModel.forward, homogeneous-graph branch, eval mode.

    encoder: SAGEConv -> ReLU -> (dropout=id) -> SAGEConv, then split by type.
    `a_dense` is the precomputed row-normalized adjacency (hoisted out of the
    hot path so it is built once per graph).
    """
    n, d_in = x.shape
    n_pad, tm, tk = _sage_tiles(n)
    din_pad = _round_up(d_in, LANE)
    emb_pad = _round_up(embedding_dim, LANE)

    # Pad + cast operands once; padded rows/cols are zero so they never
    # contaminate real rows (A columns for padded nodes are zero).
    a_p = _pad2(a_dense, n_pad, n_pad, jnp.bfloat16)
    x_p = _pad2(x, n_pad, din_pad, jnp.bfloat16)

    w0 = _stack_sage_weights(params["l0_wl"], params["l0_wr"], din_pad, emb_pad)
    b0 = _pad2(params["l0_b"].reshape(1, -1), 1, emb_pad, jnp.float32)
    w1 = _stack_sage_weights(params["l1_wl"], params["l1_wr"], emb_pad, emb_pad)
    b1 = _pad2(params["l1_b"].reshape(1, -1), 1, emb_pad, jnp.float32)

    h = sage_layer(a_p, x_p, w0, b0, apply_relu=True, tm=tm, tk=tk)
    z_pad = sage_layer(a_p, h.astype(jnp.bfloat16), w1, b1,
                       apply_relu=False, tm=tm, tk=tk)

    z = z_pad[:n, :embedding_dim]
    # Boolean-mask split is host-side glue (dynamic shapes).
    user_emb = z[node_type == 0]
    item_emb = z[node_type == 1]
    return {"user": user_emb, "song": item_emb}, z


# ----------------------------------------------------------------------------
# Demo
# ----------------------------------------------------------------------------
if __name__ == "__main__":
    key = jax.random.PRNGKey(0)
    k_feat, k_param = jax.random.split(key)

    num_users = 8
    num_items = 8
    num_nodes = num_users + num_items
    input_dim = 16
    embedding_dim = 32
    user_feature_dim = 20

    # Node features (N, input_dim) and node types (0 = user, 1 = item).
    x = jax.random.normal(k_feat, (num_nodes, input_dim), dtype=jnp.float32)
    node_type = jnp.concatenate(
        [jnp.zeros((num_users,), jnp.int32), jnp.ones((num_items,), jnp.int32)])

    # Deterministic bipartite edges user u <-> item (u % num_items), plus one extra.
    users = jnp.arange(num_users, dtype=jnp.int32)
    items = (users % num_items) + num_users
    src = jnp.concatenate([users, items, jnp.array([0], jnp.int32)])
    dst = jnp.concatenate([items, users, jnp.array([num_users + 3], jnp.int32)])
    edge_index = jnp.stack([src, dst], axis=0)

    params = init_params(k_param, input_dim, embedding_dim, user_feature_dim)

    # Adjacency is constant per graph: build once, reuse for both layers.
    a_dense = build_mean_adj(edge_index, num_nodes)

    embeddings, z_all = graphsage_forward(params, x, a_dense, node_type,
                                          embedding_dim)
    jax.block_until_ready(embeddings["user"])
    jax.block_until_ready(embeddings["song"])

    # Decoder (GraphSAGEModel.predict hot path) on a few user/item pairs.
    scores = decoder_forward(embeddings["user"], embeddings["song"], params,
                             embedding_dim)
    jax.block_until_ready(scores)

    assert embeddings["user"].shape == (num_users, embedding_dim)
    assert embeddings["song"].shape == (num_items, embedding_dim)
    assert scores.shape == (num_users, 1)
    assert bool(jnp.all(jnp.isfinite(z_all)))
    assert bool(jnp.all((scores >= 0.0) & (scores <= 1.0)))

    print("KERNEL_OK")
</pallas_src>

<mosaic_0001>
module attributes {stable_mosaic.version = 11 : i64} {
  func.func @_sage_layer_kernel(%arg0: i32, %arg1: i32, %arg2: memref<256x512xbf16, #tpu.memory_space<vmem>>, %arg3: memref<512x128xbf16, #tpu.memory_space<vmem>>, %arg4: memref<256x128xbf16, #tpu.memory_space<vmem>>, %arg5: memref<256x128xbf16, #tpu.memory_space<vmem>>, %arg6: memref<1x128xf32, #tpu.memory_space<vmem>>, %arg7: memref<256x128xf32, #tpu.memory_space<vmem>>, %arg8: memref<256x128xf32, #tpu.memory_space<vmem>>) attributes {dimension_semantics = [#tpu.dimension_semantics<parallel>, #tpu.dimension_semantics<arbitrary>], iteration_bounds = array<i64: 2, 1>, scalar_prefetch = 0 : i64, scratch_operands = 1 : i64, tpu.core_type = #tpu.core_type<tc>, window_params = [{transform_indices = @transform_0, window_bounds = array<i64: 256, 512>}, {transform_indices = @transform_1, window_bounds = array<i64: 512, 128>}, {transform_indices = @transform_2, window_bounds = array<i64: 256, 128>}, {pipeline_mode = #tpu.pipeline_mode<synchronous>, transform_indices = @transform_3, window_bounds = array<i64: 256, 128>}, {pipeline_mode = #tpu.pipeline_mode<synchronous>, transform_indices = @transform_4, window_bounds = array<i64: 1, 128>}, {transform_indices = @transform_5, window_bounds = array<i64: 256, 128>}]} {
    %c0_i32 = arith.constant 0 : i32
    %0 = arith.cmpi eq, %arg1, %c0_i32 : i32
    %1 = arith.extui %0 : i1 to i32
    %c0_i32_0 = arith.constant 0 : i32
    %2 = arith.cmpi ne, %1, %c0_i32_0 : i32
    scf.if %2 {
      %cst_10 = arith.constant 0.000000e+00 : f32
      %12 = vector.broadcast %cst_10 : f32 to vector<256x128xf32>
      %c0_11 = arith.constant 0 : index
      %c0_12 = arith.constant 0 : index
      %13 = vector.load %arg8[%c0_11, %c0_12] : memref<256x128xf32, #tpu.memory_space<vmem>>, vector<256x128xf32>
      tpu.vector_store %arg8[%c0_11, %c0_12], %12 {strides = array<i32>} : memref<256x128xf32, #tpu.memory_space<vmem>>, vector<256x128xf32>,
    } else {
    }
    %c0 = arith.constant 0 : index
    %c0_1 = arith.constant 0 : index
    %3 = vector.load %arg8[%c0, %c0_1] : memref<256x128xf32, #tpu.memory_space<vmem>>, vector<256x128xf32>
    %c0_2 = arith.constant 0 : index
    %c0_3 = arith.constant 0 : index
    %4 = vector.load %arg2[%c0_2, %c0_3] : memref<256x512xbf16, #tpu.memory_space<vmem>>, vector<256x512xbf16>
    %c0_4 = arith.constant 0 : index
    %c0_5 = arith.constant 0 : index
    %5 = vector.load %arg3[%c0_4, %c0_5] : memref<512x128xbf16, #tpu.memory_space<vmem>>, vector<512x128xbf16>
    %cst = arith.constant dense<0.000000e+00> : vector<256x128xf32>
    %6 = tpu.matmul %4, %5, %cst {dimension_numbers = #tpu.dot_dimension_numbers<[1], [0], [0], [1], [0, 0, 1, 1], [], []>} : vector<256x512xbf16>, vector<512x128xbf16>, vector<256x128xf32> -> vector<256x128xf32>
    %7 = arith.addf %3, %6 : vector<256x128xf32>
    %c0_6 = arith.constant 0 : index
    %c0_7 = arith.constant 0 : index
    %8 = vector.load %arg8[%c0_6, %c0_7] : memref<256x128xf32, #tpu.memory_space<vmem>>, vector<256x128xf32>
    tpu.vector_store %arg8[%c0_6, %c0_7], %7 {strides = array<i32>} : memref<256x128xf32, #tpu.memory_space<vmem>>, vector<256x128xf32>,
    %c0_i32_8 = arith.constant 0 : i32
    %9 = arith.cmpi eq, %arg1, %c0_i32_8 : i32
    %10 = arith.extui %9 : i1 to i32
    %c0_i32_9 = arith.constant 0 : i32
    %11 = arith.cmpi ne, %10, %c0_i32_9 : i32
    scf.if %11 {
      %c0_10 = arith.constant 0 : index
      %c0_11 = arith.constant 0 : index
      %12 = vector.load %arg8[%c0_10, %c0_11] : memref<256x128xf32, #tpu.memory_space<vmem>>, vector<256x128xf32>
      %13 = arith.truncf %12 : vector<256x128xf32> to vector<256x128xbf16>
      %c0_12 = arith.constant 0 : index
      %c0_13 = arith.constant 0 : index
      %14 = vector.load %arg4[%c0_12, %c0_13] : memref<256x128xbf16, #tpu.memory_space<vmem>>, vector<256x128xbf16>
      %15 = tpu.concatenate %13, %14 in 1 : vector<256x128xbf16>, vector<256x128xbf16> -> vector<256x256xbf16>
      %c0_14 = arith.constant 0 : index
      %c0_15 = arith.constant 0 : index
      %16 = vector.load %arg5[%c0_14, %c0_15] : memref<256x128xbf16, #tpu.memory_space<vmem>>, vector<256x128xbf16>
      %cst_16 = arith.constant dense<0.000000e+00> : vector<256x128xf32>
      %17 = tpu.matmul %15, %16, %cst_16 {dimension_numbers = #tpu.dot_dimension_numbers<[1], [0], [0], [1], [0, 0, 1, 1], [], []>} : vector<256x256xbf16>, vector<256x128xbf16>, vector<256x128xf32> -> vector<256x128xf32>
      %c0_17 = arith.constant 0 : index
      %c0_18 = arith.constant 0 : index
      %18 = vector.load %arg6[%c0_17, %c0_18] : memref<1x128xf32, #tpu.memory_space<vmem>>, vector<1x128xf32>
      %19 = vector.broadcast %18 : vector<1x128xf32> to vector<256x128xf32>
      %20 = arith.addf %17, %19 : vector<256x128xf32>
      %cst_19 = arith.constant 0.000000e+00 : f32
      %21 = vector.broadcast %cst_19 : f32 to vector<256x128xf32>
      %22 = arith.maximumf %20, %21 : vector<256x128xf32>
      %c0_20 = arith.constant 0 : index
      %c0_21 = arith.constant 0 : index
      %23 = vector.load %arg7[%c0_20, %c0_21] : memref<256x128xf32, #tpu.memory_space<vmem>>, vector<256x128xf32>
      tpu.vector_store %arg7[%c0_20, %c0_21], %22 {strides = array<i32>} : memref<256x128xf32, #tpu.memory_space<vmem>>, vector<256x128xf32>,
    } else {
    }
    return
  }
  func.func @transform_0(%arg0: i32, %arg1: i32) -> (i32, i32) {
    %c0_i32 = arith.constant 0 : i32
    return %arg0, %arg1 : i32, i32
  }
  func.func @transform_1(%arg0: i32, %arg1: i32) -> (i32, i32) {
    %c0_i32 = arith.constant 0 : i32
    %c0_i32_0 = arith.constant 0 : i32
    return %arg1, %c0_i32 : i32, i32
  }
  func.func @transform_2(%arg0: i32, %arg1: i32) -> (i32, i32) {
    %c0_i32 = arith.constant 0 : i32
    %c0_i32_0 = arith.constant 0 : i32
    return %arg0, %c0_i32 : i32, i32
  }
  func.func @transform_3(%arg0: i32, %arg1: i32) -> (i32, i32) {
    %c0_i32 = arith.constant 0 : i32
    %c0_i32_0 = arith.constant 0 : i32
    %c0_i32_1 = arith.constant 0 : i32
    return %c0_i32, %c0_i32_0 : i32, i32
  }
  func.func @transform_4(%arg0: i32, %arg1: i32) -> (i32, i32) {
    %c0_i32 = arith.constant 0 : i32
    %c0_i32_0 = arith.constant 0 : i32
    %c0_i32_1 = arith.constant 0 : i32
    return %c0_i32, %c0_i32_0 : i32, i32
  }
  func.func @transform_5(%arg0: i32, %arg1: i32) -> (i32, i32) {
    %c0_i32 = arith.constant 0 : i32
    %c0_i32_0 = arith.constant 0 : i32
    return %arg0, %c0_i32 : i32, i32
  }
}

</mosaic_0001>

<llo_original>
// kernel: tpu_custom_call.1
$region0: #{tpu_custom_call.1}
  #allocation0 [shape = 'u32[]', space=smem, size = 0x4, offset = 0x4, fixed_abs, tag = 'smem constant byte address 0x4 - core index']
  #allocation1 [shape = 'u32[72,128]{1,0:T(1,128)}', space=vmem, size = 0x9000, scoped, tag = 'internal scratch']
  #allocation2 [shape = 'f32[256,128]{1,0:T(8,128)}', space=vmem, size = 0x20000, scoped, tag = 'scratch operand']
  %s0 = inlined_call_operand.hbm [shape: bf16[512,512], index: 0, kind: input, shape index: {}]
  %s1 = inlined_call_operand.hbm [shape: bf16[512,128], index: 1, kind: input, shape index: {}]
  %s2 = inlined_call_operand.hbm [shape: bf16[512,128], index: 2, kind: input, shape index: {}]
  %s3 = inlined_call_operand.hbm [shape: bf16[256,128], index: 3, kind: input, shape index: {}]
  %s4 = inlined_call_operand.vmem [shape: f32[1,128], index: 4, kind: input, shape index: {}]
  %s5 = inlined_call_operand.hbm [shape: f32[512,128], index: 5, kind: output, shape index: {}]
  %s6 = sld [smem:[#allocation0]]
  $region77: #{tpu_custom_call.1} parent=0
    _
  %s8 = ssub.s32 1, %s6
  %s9 = scalar_select 0, %s8, %s6
  $region1: #{tpu_custom_call.1} parent=0
    #allocation3 [shape = 'u8[524288]{0}', space=vmem, size = 0x80000, scoped, tag = 'input window, operand 0']
    #allocation4 [shape = 's32[2]{0}', space=sflag, size = 0x8, scoped, tag = 'scoped memory for tpu_custom_call.1']
    #allocation5 [shape = 's32[2]{0}', space=sflag, size = 0x8, scoped, tag = 'scoped memory for tpu_custom_call.1']
    #allocation6 [shape = 'u8[131072]{0}', space=vmem, size = 0x20000, scoped, tag = 'input window, operand 1, single buffered']
    #allocation7 [shape = 's32[1]{0}', space=sflag, size = 0x4, scoped, tag = 'scoped memory for tpu_custom_call.1']
    #allocation8 [shape = 'u8[131072]{0}', space=vmem, size = 0x20000, scoped, tag = 'input window, operand 2']
    #allocation9 [shape = 'u8[65536]{0}', space=vmem, size = 0x10000, scoped, tag = 'input window, operand 3, single buffered']
    #allocation10 [shape = 'u8[262144]{0}', space=vmem, size = 0x40000, scoped, tag = 'output window, operand 0']
    %10 = vsyncpa [#allocation4], 0
    %s11 = scalar_lea.sflag [#allocation4], 1
    %12 = vsyncpa %s11, 0
    %13 = vsyncpa [#allocation7], 0
    %14 = vsyncpa [#allocation5], 0
    %s15 = scalar_lea.sflag [#allocation5], 1
    %16 = vsyncpa %s15, 0
    loop: start=0, step=1, limit=4
    $region2: #{tpu_custom_call.1} parent=1 // loop_pre_header
      _
    $region3: #{tpu_custom_call.1} parent=1 // loop_header
      %s18 = sphi 0, %s22
      %p19 = scmp.ge.s32.totalorder %s18, 4
      %s25 = sphi 0, %s37
      %s26 = sphi 0, %s33
      %s27 = sphi 0, %s25
      %s28 = sphi 0, %s26
      %s29 = sphi 0, %s27
      %s30 = sphi 0, %s28
      %s42 = sphi 0, %s44
      %s45 = sphi 0, %s42
      %s46 = sphi 0, %s45
      %s62 = sphi 0, %s46
      %s68 = sphi 0, %s70
      %s71 = sphi 0, %s68
      %s72 = sphi 0, %s71
      %s88 = sphi 0, %s72
      %s94 = sphi 0, %s96
      %s97 = sphi 0, %s94
      %s98 = sphi 0, %s97
      %s114 = sphi 0, %s98
      %s118 = sphi 0, %s118
      %s120 = sphi 0, %s118
      %s121 = sphi 0, %s120
      %s135 = sphi 0, %s121
      %s139 = sphi 0, %s139
      %s141 = sphi 0, %s139
      %s142 = sphi 0, %s141
      %s156 = sphi 0, %s142
      %s162 = sphi 0, %s164
      %s165 = sphi 0, %s162
      %s166 = sphi 0, %s165
      %s182 = sphi 0, %s166
    $region4: #{tpu_custom_call.1} parent=1 // loop_header_branch
      %21 = sbr.rel (%p19) target = $region8
    $region5: #{tpu_custom_call.1} parent=1 // loop_body
      %s23 = ssub.s32 %s18, 1
      %s24 = ssub.s32 %s18, 2
      %s31 = sadd.s32 1, %s26
      %p32 = scmp.ge.s32.totalorder %s31, 1
      %s33 = scalar_select %p32, 0, %s31
      %s34 = sadd.s32 1, %s25
      %s35 = scalar_select %p32, %s34, %s25
      %p36 = scmp.ge.s32.totalorder %s35, 2
      %s37 = scalar_select %p36, 0, %s35
      %s38 = ssub.s32 %s25, %s37
      %s39 = ssub.s32 %s26, %s33
      %s40 = sor.u32 %s38, %s39
      %p41 = scmp.eq.s32.totalorder %s40, 0
      %s43 = sadd.s32 %s42, 1
      %s44 = scalar_select %p41, %s42, %s43
      %p47 = pneg %p41
      %p48 = scmp.eq.s32.totalorder %s18, 1
      %p49 = por %p47, %p48
      %p50 = scmp.ne.s32.totalorder %s42, %s45
      %p51 = scmp.eq.s32.totalorder %s18, 0
      %p52 = por %p50, %p51
      %p53 = scmp.ne.s32.totalorder %s42, %s45
      %p54 = scmp.eq.s32.totalorder %s23, 1
      %p55 = por %p53, %p54
      %p56 = scmp.ne.s32.totalorder %s45, %s46
      %p57 = scmp.eq.s32.totalorder %s23, 0
      %p58 = por %p56, %p57
      %p59 = scmp.ne.s32.totalorder %s45, %s46
      %p60 = scmp.eq.s32.totalorder %s24, 1
      %p61 = por %p59, %p60
      %p63 = scmp.ne.s32.totalorder %s46, %s62
      %p64 = scmp.eq.s32.totalorder %s24, 0
      %p65 = por %p63, %p64
      %s66 = ssub.s32 %s26, %s33
      %p67 = scmp.eq.s32.totalorder %s66, 0
      %s69 = sadd.s32 %s68, 1
      %s70 = scalar_select %p67, %s68, %s69
      %p73 = pneg %p67
      %p74 = scmp.eq.s32.totalorder %s18, 1
      %p75 = por %p73, %p74
      %p76 = scmp.ne.s32.totalorder %s68, %s71
      %p77 = scmp.eq.s32.totalorder %s18, 0
      %p78 = por %p76, %p77
      %p79 = scmp.ne.s32.totalorder %s68, %s71
      %p80 = scmp.eq.s32.totalorder %s23, 1
      %p81 = por %p79, %p80
      %p82 = scmp.ne.s32.totalorder %s71, %s72
      %p83 = scmp.eq.s32.totalorder %s23, 0
      %p84 = por %p82, %p83
      %p85 = scmp.ne.s32.totalorder %s71, %s72
      %p86 = scmp.eq.s32.totalorder %s24, 1
      %p87 = por %p85, %p86
      %p89 = scmp.ne.s32.totalorder %s72, %s88
      %p90 = scmp.eq.s32.totalorder %s24, 0
      %p91 = por %p89, %p90
      %s92 = ssub.s32 %s25, %s37
      %p93 = scmp.eq.s32.totalorder %s92, 0
      %s95 = sadd.s32 %s94, 1
      %s96 = scalar_select %p93, %s94, %s95
      %p99 = pneg %p93
      %p100 = scmp.eq.s32.totalorder %s18, 1
      %p101 = por %p99, %p100
      %p102 = scmp.ne.s32.totalorder %s94, %s97
      %p103 = scmp.eq.s32.totalorder %s18, 0
      %p104 = por %p102, %p103
      %p105 = scmp.ne.s32.totalorder %s94, %s97
      %p106 = scmp.eq.s32.totalorder %s23, 1
      %p107 = por %p105, %p106
      %p108 = scmp.ne.s32.totalorder %s97, %s98
      %p109 = scmp.eq.s32.totalorder %s23, 0
      %p110 = por %p108, %p109
      %p111 = scmp.ne.s32.totalorder %s97, %s98
      %p112 = scmp.eq.s32.totalorder %s24, 1
      %p113 = por %p111, %p112
      %p115 = scmp.ne.s32.totalorder %s98, %s114
      %p116 = scmp.eq.s32.totalorder %s24, 0
      %p117 = por %p115, %p116
      %s119 = sadd.s32 %s118, 1
      %p122 = scmp.eq.s32.totalorder %s18, 1
      %p123 = scmp.ne.s32.totalorder %s118, %s120
      %p124 = scmp.eq.s32.totalorder %s18, 0
      %p125 = por %p123, %p124
      %p126 = scmp.ne.s32.totalorder %s118, %s120
      %p127 = scmp.eq.s32.totalorder %s23, 1
      %p128 = por %p126, %p127
      %p129 = scmp.ne.s32.totalorder %s120, %s121
      %p130 = scmp.eq.s32.totalorder %s23, 0
      %p131 = por %p129, %p130
      %p132 = scmp.ne.s32.totalorder %s120, %s121
      %p133 = scmp.eq.s32.totalorder %s24, 1
      %p134 = por %p132, %p133
      %p136 = scmp.ne.s32.totalorder %s121, %s135
      %p137 = scmp.eq.s32.totalorder %s24, 0
      %p138 = por %p136, %p137
      %s140 = sadd.s32 %s139, 1
      %p143 = scmp.eq.s32.totalorder %s18, 1
      %p144 = scmp.ne.s32.totalorder %s139, %s141
      %p145 = scmp.eq.s32.totalorder %s18, 0
      %p146 = por %p144, %p145
      %p147 = scmp.ne.s32.totalorder %s139, %s141
      %p148 = scmp.eq.s32.totalorder %s23, 1
      %p149 = por %p147, %p148
      %p150 = scmp.ne.s32.totalorder %s141, %s142
      %p151 = scmp.eq.s32.totalorder %s23, 0
      %p152 = por %p150, %p151
      %p153 = scmp.ne.s32.totalorder %s141, %s142
      %p154 = scmp.eq.s32.totalorder %s24, 1
      %p155 = por %p153, %p154
      %p157 = scmp.ne.s32.totalorder %s142, %s156
      %p158 = scmp.eq.s32.totalorder %s24, 0
      %p159 = por %p157, %p158
      %s160 = ssub.s32 %s25, %s37
      %p161 = scmp.eq.s32.totalorder %s160, 0
      %s163 = sadd.s32 %s162, 1
      %s164 = scalar_select %p161, %s162, %s163
      %p167 = pneg %p161
      %p168 = scmp.eq.s32.totalorder %s18, 1
      %p169 = por %p167, %p168
      %p170 = scmp.ne.s32.totalorder %s162, %s165
      %p171 = scmp.eq.s32.totalorder %s18, 0
      %p172 = por %p170, %p171
      %p173 = scmp.ne.s32.totalorder %s162, %s165
      %p174 = scmp.eq.s32.totalorder %s23, 1
      %p175 = por %p173, %p174
      %p176 = scmp.ne.s32.totalorder %s165, %s166
      %p177 = scmp.eq.s32.totalorder %s23, 0
      %p178 = por %p176, %p177
      %p179 = scmp.ne.s32.totalorder %s165, %s166
      %p180 = scmp.eq.s32.totalorder %s24, 1
      %p181 = por %p179, %p180
      %p183 = scmp.ne.s32.totalorder %s166, %s182
      %p184 = scmp.eq.s32.totalorder %s24, 0
      %p185 = por %p183, %p184
      %p186 = scmp.le.s32.totalorder 1, %s18
      %p187 = scmp.lt.s32.totalorder %s18, 3
      %p188 = pnand %p186, %p187
      %p189 = pneg %p188
      // Predicated region
      $region9: #{tpu_custom_call.1} parent=5 // pred_check
        _
      $region10: #{tpu_custom_call.1} parent=5 // pred_check_branch
        %191 = sbr.rel (%p188) target = $region12
      $region11: #{tpu_custom_call.1} parent=5 // pred_region
        %s192 = ssub.s32 %s18, 1
        // Predicated region
        $region13: #{tpu_custom_call.1} parent=11 // pred_check
          %p193 = pneg %p84
        $region14: #{tpu_custom_call.1} parent=11 // pred_check_branch
          %195 = sbr.rel (%p193) target = $region16
        $region15: #{tpu_custom_call.1} parent=11 // pred_region
          %s196 = smul.u32 64, %s28
          %198 = vsyncadd [#allocation7], 0
          %s199 = smul.addr %s196, 4
          %s200 = scalar_lea.hbm %s1, %s199
          %s201 = sshll.u32 %s200, 4
          %s202 = int_to_ptr.hbm [resolvable:$true] %s201
          %s203 = sshll.u32 [#allocation6], 4
          %s204 = int_to_ptr.vmem [resolvable:$true] %s203
          %209 = dma.hbm_to_vmem [thread:$0]  %s202, 4096, %s204, [#allocation7], 64, 64, 4
        $region16: #{tpu_custom_call.1} parent=11 // pred_fallthru
          _
        // Predicated region
        $region17: #{tpu_custom_call.1} parent=11 // pred_check
          %p210 = pneg %p131
        $region18: #{tpu_custom_call.1} parent=11 // pred_check_branch
          %212 = sbr.rel (%p210) target = $region20
        $region19: #{tpu_custom_call.1} parent=11 // pred_region
          %214 = vsyncadd [#allocation7], 0
          %s215 = sshll.u32 %s3, 4
          %s216 = int_to_ptr.hbm [resolvable:$true] %s215
          %s217 = sshll.u32 [#allocation9], 4
          %s218 = int_to_ptr.vmem [resolvable:$true] %s217
          %223 = dma.hbm_to_vmem [thread:$0]  %s216, 2048, %s218, [#allocation7], 64, 64, 4
        $region20: #{tpu_custom_call.1} parent=11 // pred_fallthru
          _
        // Predicated region
        $region21: #{tpu_custom_call.1} parent=11 // pred_check
          %p224 = pneg %p152
        $region22: #{tpu_custom_call.1} parent=11 // pred_check_branch
          %226 = sbr.rel (%p224) target = $region24
        $region23: #{tpu_custom_call.1} parent=11 // pred_region
          _
        $region24: #{tpu_custom_call.1} parent=11 // pred_fallthru
          _
      $region12: #{tpu_custom_call.1} parent=5 // pred_fallthru
        _
      %p227 = scmp.lt.s32.totalorder %s18, 2
      // Predicated region
      $region25: #{tpu_custom_call.1} parent=5 // pred_check
        %p228 = pneg %p227
      $region26: #{tpu_custom_call.1} parent=5 // pred_check_branch
        %230 = sbr.rel (%p228) target = $region28
      $region27: #{tpu_custom_call.1} parent=5 // pred_region
        // Predicated region
        $region29: #{tpu_custom_call.1} parent=27 // pred_check
          %p231 = pneg %p52
        $region30: #{tpu_custom_call.1} parent=27 // pred_check_branch
          %233 = sbr.rel (%p231) target = $region32
        $region31: #{tpu_custom_call.1} parent=27 // pred_region
          %s234 = sand.u32 %s18, 1
          %s235 = scalar_lea.sflag [#allocation4], %s234
          %s236 = sand.u32 %s42, 1
          %s237 = smul.addr %s236, 512
          %s238 = scalar_lea.vmem [#allocation3], %s237
          %s239 = smul.u32 32, %s25
          %s240 = smul.u32 4, %s26
          %242 = vsyncadd %s235, 0
          %s243 = smul.addr %s239, 4
          %s244 = sadd.s32 %s240, %s243
          %s245 = smul.addr %s244, 4
          %s246 = scalar_lea.hbm %s0, %s245
          %s247 = sshll.u32 %s246, 4
          %s248 = int_to_ptr.hbm [resolvable:$true] %s247
          %s249 = sshll.u32 %s238, 4
          %s250 = int_to_ptr.vmem [resolvable:$true] %s249
          %255 = dma.hbm_to_vmem [thread:$0]  %s248, 8192, %s250, %s235, 256, 256, 16
        $region32: #{tpu_custom_call.1} parent=27 // pred_fallthru
          _
        // Predicated region
        $region33: #{tpu_custom_call.1} parent=27 // pred_check
          %p256 = pneg %p104
        $region34: #{tpu_custom_call.1} parent=27 // pred_check_branch
          %258 = sbr.rel (%p256) target = $region36
        $region35: #{tpu_custom_call.1} parent=27 // pred_region
          %s259 = sand.u32 %s18, 1
          %s260 = scalar_lea.sflag [#allocation4], %s259
          %s261 = sand.u32 %s94, 1
          %s262 = smul.addr %s261, 128
          %s263 = scalar_lea.vmem [#allocation8], %s262
          %s264 = smul.u32 32, %s25
          %266 = vsyncadd %s260, 0
          %s267 = smul.addr %s264, 4
          %s268 = scalar_lea.hbm %s2, %s267
          %s269 = sshll.u32 %s268, 4
          %s270 = int_to_ptr.hbm [resolvable:$true] %s269
          %s271 = sshll.u32 %s263, 4
          %s272 = int_to_ptr.vmem [resolvable:$true] %s271
          %277 = dma.hbm_to_vmem [thread:$0]  %s270, 2048, %s272, %s260, 64, 64, 4
        $region36: #{tpu_custom_call.1} parent=27 // pred_fallthru
          _
      $region28: #{tpu_custom_call.1} parent=5 // pred_fallthru
        _
      %p278 = scmp.le.s32.totalorder 1, %s18
      %p279 = scmp.lt.s32.totalorder %s18, 3
      %p280 = pnand %p278, %p279
      %p281 = pneg %p280
      // Predicated region
      $region37: #{tpu_custom_call.1} parent=5 // pred_check
        _
      $region38: #{tpu_custom_call.1} parent=5 // pred_check_branch
        %283 = sbr.rel (%p280) target = $region40
      $region39: #{tpu_custom_call.1} parent=5 // pred_region
        %s284 = ssub.s32 %s18, 1
        %s285 = sand.u32 %s23, 1
        %s286 = scalar_lea.sflag [#allocation4], %s285
        %s287 = sand.u32 %s45, 1
        %s288 = smul.addr %s287, 512
        %s289 = scalar_lea.vmem [#allocation3], %s288
        // Predicated region
        $region41: #{tpu_custom_call.1} parent=39 // pred_check
          %p290 = pneg %p58
        $region42: #{tpu_custom_call.1} parent=39 // pred_check_branch
          %292 = sbr.rel (%p290) target = $region44
        $region43: #{tpu_custom_call.1} parent=39 // pred_region
          %294 = dma.done %s286, 8192
        $region44: #{tpu_custom_call.1} parent=39 // pred_fallthru
          _
        // Predicated region
        $region45: #{tpu_custom_call.1} parent=39 // pred_check
          %p295 = pneg %p84
        $region46: #{tpu_custom_call.1} parent=39 // pred_check_branch
          %297 = sbr.rel (%p295) target = $region48
        $region47: #{tpu_custom_call.1} parent=39 // pred_region
          %299 = dma.done [#allocation7], 4096
        $region48: #{tpu_custom_call.1} parent=39 // pred_fallthru
          _
        %s300 = sand.u32 %s23, 1
        %s301 = scalar_lea.sflag [#allocation4], %s300
        %s302 = sand.u32 %s97, 1
        %s303 = smul.addr %s302, 128
        %s304 = scalar_lea.vmem [#allocation8], %s303
        // Predicated region
        $region49: #{tpu_custom_call.1} parent=39 // pred_check
          %p305 = pneg %p110
        $region50: #{tpu_custom_call.1} parent=39 // pred_check_branch
          %307 = sbr.rel (%p305) target = $region52
        $region51: #{tpu_custom_call.1} parent=39 // pred_region
          %309 = dma.done %s301, 2048
        $region52: #{tpu_custom_call.1} parent=39 // pred_fallthru
          _
        // Predicated region
        $region53: #{tpu_custom_call.1} parent=39 // pred_check
          %p310 = pneg %p131
        $region54: #{tpu_custom_call.1} parent=39 // pred_check_branch
          %312 = sbr.rel (%p310) target = $region56
        $region55: #{tpu_custom_call.1} parent=39 // pred_region
          %314 = dma.done [#allocation7], 2048
        $region56: #{tpu_custom_call.1} parent=39 // pred_fallthru
          _
        %s315 = sand.u32 %s23, 1
        %s316 = scalar_lea.sflag [#allocation4], %s315
        %s317 = sand.u32 %s45, 1
        %s318 = smul.addr %s317, 512
        %s319 = scalar_lea.vmem [#allocation3], %s318
        %p320 = pneg %p58
        %p321 = pneg %p55
        %p322 = pneg %p84
        %p323 = pneg %p81
        %s324 = sand.u32 %s23, 1
        %s325 = scalar_lea.sflag [#allocation4], %s324
        %s326 = sand.u32 %s97, 1
        %s327 = smul.addr %s326, 128
        %s328 = scalar_lea.vmem [#allocation8], %s327
        %p329 = pneg %p110
        %p330 = pneg %p107
        %p331 = pneg %p131
        %p332 = pneg %p128
        %p333 = pneg %p152
        %p334 = pneg %p149
        %p335 = pneg %p178
        %p336 = pneg %p175
        %s337 = sand.u32 %s165, 1
        %s338 = scalar_lea.sflag [#allocation5], %s337
        %s339 = sand.u32 %s165, 1
        %s340 = smul.addr %s339, 256
        %s341 = scalar_lea.vmem [#allocation10], %s340
        %s342 = smul.u32 32, %s27
        %s343 = smul.u32 4, %s28
        %s344 = smul.u32 64, %s28
        %s345 = smul.u32 32, %s27
        %s346 = smul.u32 32, %s27
        %p347 = scmp.eq.s32.totalorder %s28, 0
        // Predicated region
        $region57: #{tpu_custom_call.1} parent=39 // pred_check
          %p348 = pneg %p347
        $region58: #{tpu_custom_call.1} parent=39 // pred_check_branch
          %350 = sbr.rel (%p348) target = $region60
        $region59: #{tpu_custom_call.1} parent=39 // pred_region
          %351 = vst [vmem:[#allocation2] sm:$0xff] 0.0
          %352 = vst [vmem:[#allocation2 + $0x8] sm:$0xff] 0.0
          %353 = vst [vmem:[#allocation2 + $0x10] sm:$0xff] 0.0
          %354 = vst [vmem:[#allocation2 + $0x18] sm:$0xff] 0.0
          %355 = vst [vmem:[#allocation2 + $0x20] sm:$0xff] 0.0
          %356 = vst [vmem:[#allocation2 + $0x28] sm:$0xff] 0.0
          %357 = vst [vmem:[#allocation2 + $0x30] sm:$0xff] 0.0
          %358 = vst [vmem:[#allocation2 + $0x38] sm:$0xff] 0.0
          %359 = vst [vmem:[#allocation2 + $0x40] sm:$0xff] 0.0
          %360 = vst [vmem:[#allocation2 + $0x48] sm:$0xff] 0.0
          %361 = vst [vmem:[#allocation2 + $0x50] sm:$0xff] 0.0
          %362 = vst [vmem:[#allocation2 + $0x58] sm:$0xff] 0.0
          %363 = vst [vmem:[#allocation2 + $0x60] sm:$0xff] 0.0
          %364 = vst [vmem:[#allocation2 + $0x68] sm:$0xff] 0.0
          %365 = vst [vmem:[#allocation2 + $0x70] sm:$0xff] 0.0
          %366 = vst [vmem:[#allocation2 + $0x78] sm:$0xff] 0.0
          %367 = vst [vmem:[#allocation2 + $0x80] sm:$0xff] 0.0
          %368 = vst [vmem:[#allocation2 + $0x88] sm:$0xff] 0.0
          %369 = vst [vmem:[#allocation2 + $0x90] sm:$0xff] 0.0
          %370 = vst [vmem:[#allocation2 + $0x98] sm:$0xff] 0.0
          %371 = vst [vmem:[#allocation2 + $0xa0] sm:$0xff] 0.0
          %372 = vst [vmem:[#allocation2 + $0xa8] sm:$0xff] 0.0
          %373 = vst [vmem:[#allocation2 + $0xb0] sm:$0xff] 0.0
          %374 = vst [vmem:[#allocation2 + $0xb8] sm:$0xff] 0.0
          %375 = vst [vmem:[#allocation2 + $0xc0] sm:$0xff] 0.0
          %376 = vst [vmem:[#allocation2 + $0xc8] sm:$0xff] 0.0
          %377 = vst [vmem:[#allocation2 + $0xd0] sm:$0xff] 0.0
          %378 = vst [vmem:[#allocation2 + $0xd8] sm:$0xff] 0.0
          %379 = vst [vmem:[#allocation2 + $0xe0] sm:$0xff] 0.0
          %380 = vst [vmem:[#allocation2 + $0xe8] sm:$0xff] 0.0
          %381 = vst [vmem:[#allocation2 + $0xf0] sm:$0xff] 0.0
          %382 = vst [vmem:[#allocation2 + $0xf8] sm:$0xff] 0.0
        $region60: #{tpu_custom_call.1} parent=39 // pred_fallthru
          _
        %v383 = vld [vmem:[#allocation2] sm:$0xff]
        %v384 = vld [vmem:[#allocation2 + $0x8] sm:$0xff]
        %v385 = vld [vmem:[#allocation2 + $0x10] sm:$0xff]
        %v386 = vld [vmem:[#allocation2 + $0x18] sm:$0xff]
        %v387 = vld [vmem:[#allocation2 + $0x20] sm:$0xff]
        %v388 = vld [vmem:[#allocation2 + $0x28] sm:$0xff]
        %v389 = vld [vmem:[#allocation2 + $0x30] sm:$0xff]
        %v390 = vld [vmem:[#allocation2 + $0x38] sm:$0xff]
        %v391 = vld [vmem:[#allocation2 + $0x40] sm:$0xff]
        %v392 = vld [vmem:[#allocation2 + $0x48] sm:$0xff]
        %v393 = vld [vmem:[#allocation2 + $0x50] sm:$0xff]
        %v394 = vld [vmem:[#allocation2 + $0x58] sm:$0xff]
        %v395 = vld [vmem:[#allocation2 + $0x60] sm:$0xff]
        %v396 = vld [vmem:[#allocation2 + $0x68] sm:$0xff]
        %v397 = vld [vmem:[#allocation2 + $0x70] sm:$0xff]
        %v398 = vld [vmem:[#allocation2 + $0x78] sm:$0xff]
        %v399 = vld [vmem:[#allocation2 + $0x80] sm:$0xff]
        %v400 = vld [vmem:[#allocation2 + $0x88] sm:$0xff]
        %v401 = vld [vmem:[#allocation2 + $0x90] sm:$0xff]
        %v402 = vld [vmem:[#allocation2 + $0x98] sm:$0xff]
        %v403 = vld [vmem:[#allocation2 + $0xa0] sm:$0xff]
        %v404 = vld [vmem:[#allocation2 + $0xa8] sm:$0xff]
        %v405 = vld [vmem:[#allocation2 + $0xb0] sm:$0xff]
        %v406 = vld [vmem:[#allocation2 + $0xb8] sm:$0xff]
        %v407 = vld [vmem:[#allocation2 + $0xc0] sm:$0xff]
        %v408 = vld [vmem:[#allocation2 + $0xc8] sm:$0xff]
        %v409 = vld [vmem:[#allocation2 + $0xd0] sm:$0xff]
        %v410 = vld [vmem:[#allocation2 + $0xd8] sm:$0xff]
        %v411 = vld [vmem:[#allocation2 + $0xe0] sm:$0xff]
        %v412 = vld [vmem:[#allocation2 + $0xe8] sm:$0xff]
        %v413 = vld [vmem:[#allocation2 + $0xf0] sm:$0xff]
        %v414 = vld [vmem:[#allocation2 + $0xf8] sm:$0xff]
        %v415 = vld [vmem:[%s289] sm:$0xff]
        %v416 = vld [vmem:[%s289 + $0x8] sm:$0xff]
        %v417 = vld [vmem:[%s289 + $0x10] sm:$0xff]
        %v418 = vld [vmem:[%s289 + $0x18] sm:$0xff]
        %v419 = vld [vmem:[%s289 + $0x20] sm:$0xff]
        %v420 = vld [vmem:[%s289 + $0x28] sm:$0xff]
        %v421 = vld [vmem:[%s289 + $0x30] sm:$0xff]
        %v422 = vld [vmem:[%s289 + $0x38] sm:$0xff]
        %v423 = vld [vmem:[%s289 + $0x40] sm:$0xff]
        %v424 = vld [vmem:[%s289 + $0x48] sm:$0xff]
        %v425 = vld [vmem:[%s289 + $0x50] sm:$0xff]
        %v426 = vld [vmem:[%s289 + $0x58] sm:$0xff]
        %v427 = vld [vmem:[%s289 + $0x60] sm:$0xff]
        %v428 = vld [vmem:[%s289 + $0x68] sm:$0xff]
        %v429 = vld [vmem:[%s289 + $0x70] sm:$0xff]
        %v430 = vld [vmem:[%s289 + $0x78] sm:$0xff]
        %v431 = vld [vmem:[%s289 + $0x80] sm:$0xff]
        %v432 = vld [vmem:[%s289 + $0x88] sm:$0xff]
        %v433 = vld [vmem:[%s289 + $0x90] sm:$0xff]
        %v434 = vld [vmem:[%s289 + $0x98] sm:$0xff]
        %v435 = vld [vmem:[%s289 + $0xa0] sm:$0xff]
        %v436 = vld [vmem:[%s289 + $0xa8] sm:$0xff]
        %v437 = vld [vmem:[%s289 + $0xb0] sm:$0xff]
        %v438 = vld [vmem:[%s289 + $0xb8] sm:$0xff]
        %v439 = vld [vmem:[%s289 + $0xc0] sm:$0xff]
        %v440 = vld [vmem:[%s289 + $0xc8] sm:$0xff]
        %v441 = vld [vmem:[%s289 + $0xd0] sm:$0xff]
        %v442 = vld [vmem:[%s289 + $0xd8] sm:$0xff]
        %v443 = vld [vmem:[%s289 + $0xe0] sm:$0xff]
        %v444 = vld [vmem:[%s289 + $0xe8] sm:$0xff]
        %v445 = vld [vmem:[%s289 + $0xf0] sm:$0xff]
        %v446 = vld [vmem:[%s289 + $0xf8] sm:$0xff]
        %v447 = vld [vmem:[%s289 + $0x100] sm:$0xff]
        %v448 = vld [vmem:[%s289 + $0x108] sm:$0xff]
        %v449 = vld [vmem:[%s289 + $0x110] sm:$0xff]
        %v450 = vld [vmem:[%s289 + $0x118] sm:$0xff]
        %v451 = vld [vmem:[%s289 + $0x120] sm:$0xff]
        %v452 = vld [vmem:[%s289 + $0x128] sm:$0xff]
        %v453 = vld [vmem:[%s289 + $0x130] sm:$0xff]
        %v454 = vld [vmem:[%s289 + $0x138] sm:$0xff]
        %v455 = vld [vmem:[%s289 + $0x140] sm:$0xff]
        %v456 = vld [vmem:[%s289 + $0x148] sm:$0xff]
        %v457 = vld [vmem:[%s289 + $0x150] sm:$0xff]
        %v458 = vld [vmem:[%s289 + $0x158] sm:$0xff]
        %v459 = vld [vmem:[%s289 + $0x160] sm:$0xff]
        %v460 = vld [vmem:[%s289 + $0x168] sm:$0xff]
        %v461 = vld [vmem:[%s289 + $0x170] sm:$0xff]
        %v462 = vld [vmem:[%s289 + $0x178] sm:$0xff]
        %v463 = vld [vmem:[%s289 + $0x180] sm:$0xff]
        %v464 = vld [vmem:[%s289 + $0x188] sm:$0xff]
        %v465 = vld [vmem:[%s289 + $0x190] sm:$0xff]
        %v466 = vld [vmem:[%s289 + $0x198] sm:$0xff]
        %v467 = vld [vmem:[%s289 + $0x1a0] sm:$0xff]
        %v468 = vld [vmem:[%s289 + $0x1a8] sm:$0xff]
        %v469 = vld [vmem:[%s289 + $0x1b0] sm:$0xff]
        %v470 = vld [vmem:[%s289 + $0x1b8] sm:$0xff]
        %v471 = vld [vmem:[%s289 + $0x1c0] sm:$0xff]
        %v472 = vld [vmem:[%s289 + $0x1c8] sm:$0xff]
        %v473 = vld [vmem:[%s289 + $0x1d0] sm:$0xff]
        %v474 = vld [vmem:[%s289 + $0x1d8] sm:$0xff]
        %v475 = vld [vmem:[%s289 + $0x1e0] sm:$0xff]
        %v476 = vld [vmem:[%s289 + $0x1e8] sm:$0xff]
        %v477 = vld [vmem:[%s289 + $0x1f0] sm:$0xff]
        %v478 = vld [vmem:[%s289 + $0x1f8] sm:$0xff]
        %v479 = vld [vmem:[#allocation6] sm:$0xf]
        %v480 = vld [vmem:[#allocation6 + $0x4] sm:$0xf]
        %v481 = vld [vmem:[#allocation6 + $0x8] sm:$0xf]
        %v482 = vld [vmem:[#allocation6 + $0xc] sm:$0xf]
        %v483 = vld [vmem:[#allocation6 + $0x10] sm:$0xf]
        %v484 = vld [vmem:[#allocation6 + $0x14] sm:$0xf]
        %v485 = vld [vmem:[#allocation6 + $0x18] sm:$0xf]
        %v486 = vld [vmem:[#allocation6 + $0x1c] sm:$0xf]
        %v487 = vld [vmem:[#allocation6 + $0x20] sm:$0xf]
        %v488 = vld [vmem:[#allocation6 + $0x24] sm:$0xf]
        %v489 = vld [vmem:[#allocation6 + $0x28] sm:$0xf]
        %v490 = vld [vmem:[#allocation6 + $0x2c] sm:$0xf]
        %v491 = vld [vmem:[#allocation6 + $0x30] sm:$0xf]
        %v492 = vld [vmem:[#allocation6 + $0x34] sm:$0xf]
        %v493 = vld [vmem:[#allocation6 + $0x38] sm:$0xf]
        %v494 = vld [vmem:[#allocation6 + $0x3c] sm:$0xf]
        %v495 = vld [vmem:[#allocation6 + $0x40] sm:$0xf]
        %v496 = vld [vmem:[#allocation6 + $0x44] sm:$0xf]
        %v497 = vld [vmem:[#allocation6 + $0x48] sm:$0xf]
        %v498 = vld [vmem:[#allocation6 + $0x4c] sm:$0xf]
        %v499 = vld [vmem:[#allocation6 + $0x50] sm:$0xf]
        %v500 = vld [vmem:[#allocation6 + $0x54] sm:$0xf]
        %v501 = vld [vmem:[#allocation6 + $0x58] sm:$0xf]
        %v502 = vld [vmem:[#allocation6 + $0x5c] sm:$0xf]
        %v503 = vld [vmem:[#allocation6 + $0x60] sm:$0xf]
        %v504 = vld [vmem:[#allocation6 + $0x64] sm:$0xf]
        %v505 = vld [vmem:[#allocation6 + $0x68] sm:$0xf]
        %v506 = vld [vmem:[#allocation6 + $0x6c] sm:$0xf]
        %v507 = vld [vmem:[#allocation6 + $0x70] sm:$0xf]
        %v508 = vld [vmem:[#allocation6 + $0x74] sm:$0xf]
        %v509 = vld [vmem:[#allocation6 + $0x78] sm:$0xf]
        %v510 = vld [vmem:[#allocation6 + $0x7c] sm:$0xf]
        %v511 = vld [vmem:[#allocation6 + $0x80] sm:$0xf]
        %v512 = vld [vmem:[#allocation6 + $0x84] sm:$0xf]
        %v513 = vld [vmem:[#allocation6 + $0x88] sm:$0xf]
        %v514 = vld [vmem:[#allocation6 + $0x8c] sm:$0xf]
        %v515 = vld [vmem:[#allocation6 + $0x90] sm:$0xf]
        %v516 = vld [vmem:[#allocation6 + $0x94] sm:$0xf]
        %v517 = vld [vmem:[#allocation6 + $0x98] sm:$0xf]
        %v518 = vld [vmem:[#allocation6 + $0x9c] sm:$0xf]
        %v519 = vld [vmem:[#allocation6 + $0xa0] sm:$0xf]
        %v520 = vld [vmem:[#allocation6 + $0xa4] sm:$0xf]
        %v521 = vld [vmem:[#allocation6 + $0xa8] sm:$0xf]
        %v522 = vld [vmem:[#allocation6 + $0xac] sm:$0xf]
        %v523 = vld [vmem:[#allocation6 + $0xb0] sm:$0xf]
        %v524 = vld [vmem:[#allocation6 + $0xb4] sm:$0xf]
        %v525 = vld [vmem:[#allocation6 + $0xb8] sm:$0xf]
        %v526 = vld [vmem:[#allocation6 + $0xbc] sm:$0xf]
        %v527 = vld [vmem:[#allocation6 + $0xc0] sm:$0xf]
        %v528 = vld [vmem:[#allocation6 + $0xc4] sm:$0xf]
        %v529 = vld [vmem:[#allocation6 + $0xc8] sm:$0xf]
        %v530 = vld [vmem:[#allocation6 + $0xcc] sm:$0xf]
        %v531 = vld [vmem:[#allocation6 + $0xd0] sm:$0xf]
        %v532 = vld [vmem:[#allocation6 + $0xd4] sm:$0xf]
        %v533 = vld [vmem:[#allocation6 + $0xd8] sm:$0xf]
        %v534 = vld [vmem:[#allocation6 + $0xdc] sm:$0xf]
        %v535 = vld [vmem:[#allocation6 + $0xe0] sm:$0xf]
        %v536 = vld [vmem:[#allocation6 + $0xe4] sm:$0xf]
        %v537 = vld [vmem:[#allocation6 + $0xe8] sm:$0xf]
        %v538 = vld [vmem:[#allocation6 + $0xec] sm:$0xf]
        %v539 = vld [vmem:[#allocation6 + $0xf0] sm:$0xf]
        %v540 = vld [vmem:[#allocation6 + $0xf4] sm:$0xf]
        %v541 = vld [vmem:[#allocation6 + $0xf8] sm:$0xf]
        %v542 = vld [vmem:[#allocation6 + $0xfc] sm:$0xf]
        %v607 = vunpack.c.l.b16 %v415
        %v608 = vunpack.c.h.b16 %v415
        %v609 = vunpack.c.l.b16 %v416
        %v610 = vunpack.c.h.b16 %v416
        %v611 = vunpack.c.l.b16 %v417
        %v612 = vunpack.c.h.b16 %v417
        %v613 = vunpack.c.l.b16 %v418
        %v614 = vunpack.c.h.b16 %v418
        %v615 = vunpack.c.l.b16 %v419
        %v616 = vunpack.c.h.b16 %v419
        %v617 = vunpack.c.l.b16 %v420
        %v618 = vunpack.c.h.b16 %v420
        %v619 = vunpack.c.l.b16 %v421
        %v620 = vunpack.c.h.b16 %v421
        %v621 = vunpack.c.l.b16 %v422
        %v622 = vunpack.c.h.b16 %v422
        %v623 = vunpack.c.l.b16 %v423
        %v624 = vunpack.c.h.b16 %v423
        %v625 = vunpack.c.l.b16 %v424
        %v626 = vunpack.c.h.b16 %v424
        %v627 = vunpack.c.l.b16 %v425
        %v628 = vunpack.c.h.b16 %v425
        %v629 = vunpack.c.l.b16 %v426
        %v630 = vunpack.c.h.b16 %v426
        %v631 = vunpack.c.l.b16 %v427
        %v632 = vunpack.c.h.b16 %v427
        %v633 = vunpack.c.l.b16 %v428
        %v634 = vunpack.c.h.b16 %v428
        %v635 = vunpack.c.l.b16 %v429
        %v636 = vunpack.c.h.b16 %v429
        %v637 = vunpack.c.l.b16 %v430
        %v638 = vunpack.c.h.b16 %v430
        %v639 = vunpack.c.l.b16 %v431
        %v640 = vunpack.c.h.b16 %v431
        %v641 = vunpack.c.l.b16 %v432
        %v642 = vunpack.c.h.b16 %v432
        %v643 = vunpack.c.l.b16 %v433
        %v644 = vunpack.c.h.b16 %v433
        %v645 = vunpack.c.l.b16 %v434
        %v646 = vunpack.c.h.b16 %v434
        %v647 = vunpack.c.l.b16 %v435
        %v648 = vunpack.c.h.b16 %v435
        %v649 = vunpack.c.l.b16 %v436
        %v650 = vunpack.c.h.b16 %v436
        %v651 = vunpack.c.l.b16 %v437
        %v652 = vunpack.c.h.b16 %v437
        %v653 = vunpack.c.l.b16 %v438
        %v654 = vunpack.c.h.b16 %v438
        %v655 = vunpack.c.l.b16 %v439
        %v656 = vunpack.c.h.b16 %v439
        %v657 = vunpack.c.l.b16 %v440
        %v658 = vunpack.c.h.b16 %v440
        %v659 = vunpack.c.l.b16 %v441
        %v660 = vunpack.c.h.b16 %v441
        %v661 = vunpack.c.l.b16 %v442
        %v662 = vunpack.c.h.b16 %v442
        %v663 = vunpack.c.l.b16 %v443
        %v664 = vunpack.c.h.b16 %v443
        %v665 = vunpack.c.l.b16 %v444
        %v666 = vunpack.c.h.b16 %v444
        %v667 = vunpack.c.l.b16 %v445
        %v668 = vunpack.c.h.b16 %v445
        %v669 = vunpack.c.l.b16 %v446
        %v670 = vunpack.c.h.b16 %v446
        %v671 = vunpack.c.l.b16 %v447
        %v672 = vunpack.c.h.b16 %v447
        %v673 = vunpack.c.l.b16 %v448
        %v674 = vunpack.c.h.b16 %v448
        %v675 = vunpack.c.l.b16 %v449
        %v676 = vunpack.c.h.b16 %v449
        %v677 = vunpack.c.l.b16 %v450
        %v678 = vunpack.c.h.b16 %v450
        %v679 = vunpack.c.l.b16 %v451
        %v680 = vunpack.c.h.b16 %v451
        %v681 = vunpack.c.l.b16 %v452
        %v682 = vunpack.c.h.b16 %v452
        %v683 = vunpack.c.l.b16 %v453
        %v684 = vunpack.c.h.b16 %v453
        %v685 = vunpack.c.l.b16 %v454
        %v686 = vunpack.c.h.b16 %v454
        %v687 = vunpack.c.l.b16 %v455
        %v688 = vunpack.c.h.b16 %v455
        %v689 = vunpack.c.l.b16 %v456
        %v690 = vunpack.c.h.b16 %v456
        %v691 = vunpack.c.l.b16 %v457
        %v692 = vunpack.c.h.b16 %v457
        %v693 = vunpack.c.l.b16 %v458
        %v694 = vunpack.c.h.b16 %v458
        %v695 = vunpack.c.l.b16 %v459
        %v696 = vunpack.c.h.b16 %v459
        %v697 = vunpack.c.l.b16 %v460
        %v698 = vunpack.c.h.b16 %v460
        %v699 = vunpack.c.l.b16 %v461
        %v700 = vunpack.c.h.b16 %v461
        %v701 = vunpack.c.l.b16 %v462
        %v702 = vunpack.c.h.b16 %v462
        %v703 = vunpack.c.l.b16 %v463
        %v704 = vunpack.c.h.b16 %v463
        %v705 = vunpack.c.l.b16 %v464
        %v706 = vunpack.c.h.b16 %v464
        %v707 = vunpack.c.l.b16 %v465
        %v708 = vunpack.c.h.b16 %v465
        %v709 = vunpack.c.l.b16 %v466
        %v710 = vunpack.c.h.b16 %v466
        %v711 = vunpack.c.l.b16 %v467
        %v712 = vunpack.c.h.b16 %v467
        %v713 = vunpack.c.l.b16 %v468
        %v714 = vunpack.c.h.b16 %v468
        %v715 = vunpack.c.l.b16 %v469
        %v716 = vunpack.c.h.b16 %v469
        %v717 = vunpack.c.l.b16 %v470
        %v718 = vunpack.c.h.b16 %v470
        %v719 = vunpack.c.l.b16 %v471
        %v720 = vunpack.c.h.b16 %v471
        %v721 = vunpack.c.l.b16 %v472
        %v722 = vunpack.c.h.b16 %v472
        %v723 = vunpack.c.l.b16 %v473
        %v724 = vunpack.c.h.b16 %v473
        %v725 = vunpack.c.l.b16 %v474
        %v726 = vunpack.c.h.b16 %v474
        %v727 = vunpack.c.l.b16 %v475
        %v728 = vunpack.c.h.b16 %v475
        %v729 = vunpack.c.l.b16 %v476
        %v730 = vunpack.c.h.b16 %v476
        %v731 = vunpack.c.l.b16 %v477
        %v732 = vunpack.c.h.b16 %v477
        %v733 = vunpack.c.l.b16 %v478
        %v734 = vunpack.c.h.b16 %v478
        %v735 = vpack.c.b16 %v611, %v607
        %v736 = vpack.c.b16 %v612, %v608
        %v737 = vpack.c.b16 %v613, %v609
        %v738 = vpack.c.b16 %v614, %v610
        %v739 = vpack.c.b16 %v619, %v615
        %v740 = vpack.c.b16 %v620, %v616
        %v741 = vpack.c.b16 %v621, %v617
        %v742 = vpack.c.b16 %v622, %v618
        %v743 = vpack.c.b16 %v627, %v623
        %v744 = vpack.c.b16 %v628, %v624
        %v745 = vpack.c.b16 %v629, %v625
        %v746 = vpack.c.b16 %v630, %v626
        %v747 = vpack.c.b16 %v635, %v631
        %v748 = vpack.c.b16 %v636, %v632
        %v749 = vpack.c.b16 %v637, %v633
        %v750 = vpack.c.b16 %v638, %v634
        %v751 = vpack.c.b16 %v643, %v639
        %v752 = vpack.c.b16 %v644, %v640
        %v753 = vpack.c.b16 %v645, %v641
        %v754 = vpack.c.b16 %v646, %v642
        %v755 = vpack.c.b16 %v651, %v647
        %v756 = vpack.c.b16 %v652, %v648
        %v757 = vpack.c.b16 %v653, %v649
        %v758 = vpack.c.b16 %v654, %v650
        %v759 = vpack.c.b16 %v659, %v655
        %v760 = vpack.c.b16 %v660, %v656
        %v761 = vpack.c.b16 %v661, %v657
        %v762 = vpack.c.b16 %v662, %v658
        %v763 = vpack.c.b16 %v667, %v663
        %v764 = vpack.c.b16 %v668, %v664
        %v765 = vpack.c.b16 %v669, %v665
        %v766 = vpack.c.b16 %v670, %v666
        %v767 = vpack.c.b16 %v675, %v671
        %v768 = vpack.c.b16 %v676, %v672
        %v769 = vpack.c.b16 %v677, %v673
        %v770 = vpack.c.b16 %v678, %v674
        %v771 = vpack.c.b16 %v683, %v679
        %v772 = vpack.c.b16 %v684, %v680
        %v773 = vpack.c.b16 %v685, %v681
        %v774 = vpack.c.b16 %v686, %v682
        %v775 = vpack.c.b16 %v691, %v687
        %v776 = vpack.c.b16 %v692, %v688
        %v777 = vpack.c.b16 %v693, %v689
        %v778 = vpack.c.b16 %v694, %v690
        %v779 = vpack.c.b16 %v699, %v695
        %v780 = vpack.c.b16 %v700, %v696
        %v781 = vpack.c.b16 %v701, %v697
        %v782 = vpack.c.b16 %v702, %v698
        %v783 = vpack.c.b16 %v707, %v703
        %v784 = vpack.c.b16 %v708, %v704
        %v785 = vpack.c.b16 %v709, %v705
        %v786 = vpack.c.b16 %v710, %v706
        %v787 = vpack.c.b16 %v715, %v711
        %v788 = vpack.c.b16 %v716, %v712
        %v789 = vpack.c.b16 %v717, %v713
        %v790 = vpack.c.b16 %v718, %v714
        %v791 = vpack.c.b16 %v723, %v719
        %v792 = vpack.c.b16 %v724, %v720
        %v793 = vpack.c.b16 %v725, %v721
        %v794 = vpack.c.b16 %v726, %v722
        %v795 = vpack.c.b16 %v731, %v727
        %v796 = vpack.c.b16 %v732, %v728
        %v797 = vpack.c.b16 %v733, %v729
        %v798 = vpack.c.b16 %v734, %v730
        %v927 = vunpack.c.l.b16 %v479
        %v928 = vunpack.c.l.b16 %v480
        %v929 = vunpack.c.l.b16 %v481
        %v930 = vunpack.c.l.b16 %v482
        %v931 = vunpack.c.l.b16 %v483
        %v932 = vunpack.c.l.b16 %v484
        %v933 = vunpack.c.l.b16 %v485
        %v934 = vunpack.c.l.b16 %v486
        %v935 = vunpack.c.l.b16 %v487
        %v936 = vunpack.c.l.b16 %v488
        %v937 = vunpack.c.l.b16 %v489
        %v938 = vunpack.c.l.b16 %v490
        %v939 = vunpack.c.l.b16 %v491
        %v940 = vunpack.c.l.b16 %v492
        %v941 = vunpack.c.l.b16 %v493
        %v942 = vunpack.c.l.b16 %v494
        %v943 = vunpack.c.l.b16 %v495
        %v944 = vunpack.c.l.b16 %v496
        %v945 = vunpack.c.l.b16 %v497
        %v946 = vunpack.c.l.b16 %v498
        %v947 = vunpack.c.l.b16 %v499
        %v948 = vunpack.c.l.b16 %v500
        %v949 = vunpack.c.l.b16 %v501
        %v950 = vunpack.c.l.b16 %v502
        %v951 = vunpack.c.l.b16 %v503
        %v952 = vunpack.c.l.b16 %v504
        %v953 = vunpack.c.l.b16 %v505
        %v954 = vunpack.c.l.b16 %v506
        %v955 = vunpack.c.l.b16 %v507
        %v956 = vunpack.c.l.b16 %v508
        %v957 = vunpack.c.l.b16 %v509
        %v958 = vunpack.c.l.b16 %v510
        %v959 = vunpack.c.l.b16 %v511
        %v960 = vunpack.c.l.b16 %v512
        %v961 = vunpack.c.l.b16 %v513
        %v962 = vunpack.c.l.b16 %v514
        %v963 = vunpack.c.l.b16 %v515
        %v964 = vunpack.c.l.b16 %v516
        %v965 = vunpack.c.l.b16 %v517
        %v966 = vunpack.c.l.b16 %v518
        %v967 = vunpack.c.l.b16 %v519
        %v968 = vunpack.c.l.b16 %v520
        %v969 = vunpack.c.l.b16 %v521
        %v970 = vunpack.c.l.b16 %v522
        %v971 = vunpack.c.l.b16 %v523
        %v972 = vunpack.c.l.b16 %v524
        %v973 = vunpack.c.l.b16 %v525
        %v974 = vunpack.c.l.b16 %v526
        %v975 = vunpack.c.l.b16 %v527
        %v976 = vunpack.c.l.b16 %v528
        %v977 = vunpack.c.l.b16 %v529
        %v978 = vunpack.c.l.b16 %v530
        %v979 = vunpack.c.l.b16 %v531
        %v980 = vunpack.c.l.b16 %v532
        %v981 = vunpack.c.l.b16 %v533
        %v982 = vunpack.c.l.b16 %v534
        %v983 = vunpack.c.l.b16 %v535
        %v984 = vunpack.c.l.b16 %v536
        %v985 = vunpack.c.l.b16 %v537
        %v986 = vunpack.c.l.b16 %v538
        %v987 = vunpack.c.l.b16 %v539
        %v988 = vunpack.c.l.b16 %v540
        %v989 = vunpack.c.l.b16 %v541
        %v990 = vunpack.c.l.b16 %v542
        %v991 = vpack.c.b16 %v928, %v927
        %v992 = vpack.c.b16 %v930, %v929
        %v993 = vpack.c.b16 %v932, %v931
        %v994 = vpack.c.b16 %v934, %v933
        %v995 = vpack.c.b16 %v936, %v935
        %v996 = vpack.c.b16 %v938, %v937
        %v997 = vpack.c.b16 %v940, %v939
        %v998 = vpack.c.b16 %v942, %v941
        %v999 = vpack.c.b16 %v944, %v943
        %v1000 = vpack.c.b16 %v946, %v945
        %v1001 = vpack.c.b16 %v948, %v947
        %v1002 = vpack.c.b16 %v950, %v949
        %v1003 = vpack.c.b16 %v952, %v951
        %v1004 = vpack.c.b16 %v954, %v953
        %v1005 = vpack.c.b16 %v956, %v955
        %v1006 = vpack.c.b16 %v958, %v957
        %v1007 = vpack.c.b16 %v960, %v959
        %v1008 = vpack.c.b16 %v962, %v961
        %v1009 = vpack.c.b16 %v964, %v963
        %v1010 = vpack.c.b16 %v966, %v965
        %v1011 = vpack.c.b16 %v968, %v967
        %v1012 = vpack.c.b16 %v970, %v969
        %v1013 = vpack.c.b16 %v972, %v971
        %v1014 = vpack.c.b16 %v974, %v973
        %v1015 = vpack.c.b16 %v976, %v975
        %v1016 = vpack.c.b16 %v978, %v977
        %v1017 = vpack.c.b16 %v980, %v979
        %v1018 = vpack.c.b16 %v982, %v981
        %v1019 = vpack.c.b16 %v984, %v983
        %v1020 = vpack.c.b16 %v986, %v985
        %v1021 = vpack.c.b16 %v988, %v987
        %v1022 = vpack.c.b16 %v990, %v989
        %1055 = vmatpush.bf16.msra.mxu0 %v998
        %1056 = vmatpush.bf16.msra.mxu0 %v997
        %1057 = vmatpush.bf16.msra.mxu0 %v996
        %1058 = vmatpush.bf16.msra.mxu0 %v995
        %1059 = vmatpush.bf16.msra.mxu0 %v994
        %1060 = vmatpush.bf16.msra.mxu0 %v993
        %1061 = vmatpush.bf16.msra.mxu0 %v992
        %1062 = vmatpush.bf16.msra.mxu0 %v991
        %1063 = vmatmul.bf16.gmra.mxu0 %v735
        %v1064 = vpop.f32.mrf.mxu0
        %v1065 = vadd.f32 0.0, %v1064
        %v1066 = vpop.f32.mrf.mxu0
        %v1067 = vadd.f32 0.0, %v1066
        %1068 = vmatmul.bf16.gmra.mxu0 %v739
        %v1069 = vpop.f32.mrf.mxu0
        %v1070 = vadd.f32 0.0, %v1069
        %v1071 = vpop.f32.mrf.mxu0
        %v1072 = vadd.f32 0.0, %v1071
        %1073 = vmatmul.bf16.gmra.mxu0 %v743
        %v1074 = vpop.f32.mrf.mxu0
        %v1075 = vadd.f32 0.0, %v1074
        %v1076 = vpop.f32.mrf.mxu0
        %v1077 = vadd.f32 0.0, %v1076
        %1078 = vmatmul.bf16.gmra.mxu0 %v747
        %v1079 = vpop.f32.mrf.mxu0
        %v1080 = vadd.f32 0.0, %v1079
        %v1081 = vpop.f32.mrf.mxu0
        %v1082 = vadd.f32 0.0, %v1081
        %1083 = vmatmul.bf16.gmra.mxu0 %v751
        %v1084 = vpop.f32.mrf.mxu0
        %v1085 = vadd.f32 0.0, %v1084
        %v1086 = vpop.f32.mrf.mxu0
        %v1087 = vadd.f32 0.0, %v1086
        %1088 = vmatmul.bf16.gmra.mxu0 %v755
        %v1089 = vpop.f32.mrf.mxu0
        %v1090 = vadd.f32 0.0, %v1089
        %v1091 = vpop.f32.mrf.mxu0
        %v1092 = vadd.f32 0.0, %v1091
        %1093 = vmatmul.bf16.gmra.mxu0 %v759
        %v1094 = vpop.f32.mrf.mxu0
        %v1095 = vadd.f32 0.0, %v1094
        %v1096 = vpop.f32.mrf.mxu0
        %v1097 = vadd.f32 0.0, %v1096
        %1098 = vmatmul.bf16.gmra.mxu0 %v763
        %v1099 = vpop.f32.mrf.mxu0
        %v1100 = vadd.f32 0.0, %v1099
        %v1101 = vpop.f32.mrf.mxu0
        %v1102 = vadd.f32 0.0, %v1101
        %1103 = vmatmul.bf16.gmra.mxu0 %v767
        %v1104 = vpop.f32.mrf.mxu0
        %v1105 = vadd.f32 0.0, %v1104
        %v1106 = vpop.f32.mrf.mxu0
        %v1107 = vadd.f32 0.0, %v1106
        %1108 = vmatmul.bf16.gmra.mxu0 %v771
        %v1109 = vpop.f32.mrf.mxu0
        %v1110 = vadd.f32 0.0, %v1109
        %v1111 = vpop.f32.mrf.mxu0
        %v1112 = vadd.f32 0.0, %v1111
        %1113 = vmatmul.bf16.gmra.mxu0 %v775
        %v1114 = vpop.f32.mrf.mxu0
        %v1115 = vadd.f32 0.0, %v1114
        %v1116 = vpop.f32.mrf.mxu0
        %v1117 = vadd.f32 0.0, %v1116
        %1118 = vmatmul.bf16.gmra.mxu0 %v779
        %v1119 = vpop.f32.mrf.mxu0
        %v1120 = vadd.f32 0.0, %v1119
        %v1121 = vpop.f32.mrf.mxu0
        %v1122 = vadd.f32 0.0, %v1121
        %1123 = vmatmul.bf16.gmra.mxu0 %v783
        %v1124 = vpop.f32.mrf.mxu0
        %v1125 = vadd.f32 0.0, %v1124
        %v1126 = vpop.f32.mrf.mxu0
        %v1127 = vadd.f32 0.0, %v1126
        %1128 = vmatmul.bf16.gmra.mxu0 %v787
        %v1129 = vpop.f32.mrf.mxu0
        %v1130 = vadd.f32 0.0, %v1129
        %v1131 = vpop.f32.mrf.mxu0
        %v1132 = vadd.f32 0.0, %v1131
        %1133 = vmatmul.bf16.gmra.mxu0 %v791
        %v1134 = vpop.f32.mrf.mxu0
        %v1135 = vadd.f32 0.0, %v1134
        %v1136 = vpop.f32.mrf.mxu0
        %v1137 = vadd.f32 0.0, %v1136
        %1138 = vmatmul.bf16.gmra.mxu0 %v795
        %v1139 = vpop.f32.mrf.mxu0
        %v1140 = vadd.f32 0.0, %v1139
        %v1141 = vpop.f32.mrf.mxu0
        %v1142 = vadd.f32 0.0, %v1141
        %1143 = vdwg.mxu0
        %1144 = vmatpush.bf16.msra.mxu0 %v1006
        %1145 = vmatpush.bf16.msra.mxu0 %v1005
        %1146 = vmatpush.bf16.msra.mxu0 %v1004
        %1147 = vmatpush.bf16.msra.mxu0 %v1003
        %1148 = vmatpush.bf16.msra.mxu0 %v1002
        %1149 = vmatpush.bf16.msra.mxu0 %v1001
        %1150 = vmatpush.bf16.msra.mxu0 %v1000
        %1151 = vmatpush.bf16.msra.mxu0 %v999
        %1152 = vmatmul.bf16.gmra.mxu0 %v736
        %v1153 = vpop.f32.mrf.mxu0
        %v1154 = vadd.f32 %v1065, %v1153
        %v1155 = vpop.f32.mrf.mxu0
        %v1156 = vadd.f32 %v1067, %v1155
        %1157 = vmatmul.bf16.gmra.mxu0 %v740
        %v1158 = vpop.f32.mrf.mxu0
        %v1159 = vadd.f32 %v1070, %v1158
        %v1160 = vpop.f32.mrf.mxu0
        %v1161 = vadd.f32 %v1072, %v1160
        %1162 = vmatmul.bf16.gmra.mxu0 %v744
        %v1163 = vpop.f32.mrf.mxu0
        %v1164 = vadd.f32 %v1075, %v1163
        %v1165 = vpop.f32.mrf.mxu0
        %v1166 = vadd.f32 %v1077, %v1165
        %1167 = vmatmul.bf16.gmra.mxu0 %v748
        %v1168 = vpop.f32.mrf.mxu0
        %v1169 = vadd.f32 %v1080, %v1168
        %v1170 = vpop.f32.mrf.mxu0
        %v1171 = vadd.f32 %v1082, %v1170
        %1172 = vmatmul.bf16.gmra.mxu0 %v752
        %v1173 = vpop.f32.mrf.mxu0
        %v1174 = vadd.f32 %v1085, %v1173
        %v1175 = vpop.f32.mrf.mxu0
        %v1176 = vadd.f32 %v1087, %v1175
        %1177 = vmatmul.bf16.gmra.mxu0 %v756
        %v1178 = vpop.f32.mrf.mxu0
        %v1179 = vadd.f32 %v1090, %v1178
        %v1180 = vpop.f32.mrf.mxu0
        %v1181 = vadd.f32 %v1092, %v1180
        %1182 = vmatmul.bf16.gmra.mxu0 %v760
        %v1183 = vpop.f32.mrf.mxu0
        %v1184 = vadd.f32 %v1095, %v1183
        %v1185 = vpop.f32.mrf.mxu0
        %v1186 = vadd.f32 %v1097, %v1185
        %1187 = vmatmul.bf16.gmra.mxu0 %v764
        %v1188 = vpop.f32.mrf.mxu0
        %v1189 = vadd.f32 %v1100, %v1188
        %v1190 = vpop.f32.mrf.mxu0
        %v1191 = vadd.f32 %v1102, %v1190
        %1192 = vmatmul.bf16.gmra.mxu0 %v768
        %v1193 = vpop.f32.mrf.mxu0
        %v1194 = vadd.f32 %v1105, %v1193
        %v1195 = vpop.f32.mrf.mxu0
        %v1196 = vadd.f32 %v1107, %v1195
        %1197 = vmatmul.bf16.gmra.mxu0 %v772
        %v1198 = vpop.f32.mrf.mxu0
        %v1199 = vadd.f32 %v1110, %v1198
        %v1200 = vpop.f32.mrf.mxu0
        %v1201 = vadd.f32 %v1112, %v1200
        %1202 = vmatmul.bf16.gmra.mxu0 %v776
        %v1203 = vpop.f32.mrf.mxu0
        %v1204 = vadd.f32 %v1115, %v1203
        %v1205 = vpop.f32.mrf.mxu0
        %v1206 = vadd.f32 %v1117, %v1205
        %1207 = vmatmul.bf16.gmra.mxu0 %v780
        %v1208 = vpop.f32.mrf.mxu0
        %v1209 = vadd.f32 %v1120, %v1208
        %v1210 = vpop.f32.mrf.mxu0
        %v1211 = vadd.f32 %v1122, %v1210
        %1212 = vmatmul.bf16.gmra.mxu0 %v784
        %v1213 = vpop.f32.mrf.mxu0
        %v1214 = vadd.f32 %v1125, %v1213
        %v1215 = vpop.f32.mrf.mxu0
        %v1216 = vadd.f32 %v1127, %v1215
        %1217 = vmatmul.bf16.gmra.mxu0 %v788
        %v1218 = vpop.f32.mrf.mxu0
        %v1219 = vadd.f32 %v1130, %v1218
        %v1220 = vpop.f32.mrf.mxu0
        %v1221 = vadd.f32 %v1132, %v1220
        %1222 = vmatmul.bf16.gmra.mxu0 %v792
        %v1223 = vpop.f32.mrf.mxu0
        %v1224 = vadd.f32 %v1135, %v1223
        %v1225 = vpop.f32.mrf.mxu0
        %v1226 = vadd.f32 %v1137, %v1225
        %1227 = vmatmul.bf16.gmra.mxu0 %v796
        %v1228 = vpop.f32.mrf.mxu0
        %v1229 = vadd.f32 %v1140, %v1228
        %v1230 = vpop.f32.mrf.mxu0
        %v1231 = vadd.f32 %v1142, %v1230
        %1232 = vdwg.mxu0
        %1233 = vmatpush.bf16.msra.mxu0 %v1014
        %1234 = vmatpush.bf16.msra.mxu0 %v1013
        %1235 = vmatpush.bf16.msra.mxu0 %v1012
        %1236 = vmatpush.bf16.msra.mxu0 %v1011
        %1237 = vmatpush.bf16.msra.mxu0 %v1010
        %1238 = vmatpush.bf16.msra.mxu0 %v1009
        %1239 = vmatpush.bf16.msra.mxu0 %v1008
        %1240 = vmatpush.bf16.msra.mxu0 %v1007
        %1241 = vmatmul.bf16.gmra.mxu0 %v737
        %v1242 = vpop.f32.mrf.mxu0
        %v1243 = vadd.f32 %v1154, %v1242
        %v1244 = vpop.f32.mrf.mxu0
        %v1245 = vadd.f32 %v1156, %v1244
        %1246 = vmatmul.bf16.gmra.mxu0 %v741
        %v1247 = vpop.f32.mrf.mxu0
        %v1248 = vadd.f32 %v1159, %v1247
        %v1249 = vpop.f32.mrf.mxu0
        %v1250 = vadd.f32 %v1161, %v1249
        %1251 = vmatmul.bf16.gmra.mxu0 %v745
        %v1252 = vpop.f32.mrf.mxu0
        %v1253 = vadd.f32 %v1164, %v1252
        %v1254 = vpop.f32.mrf.mxu0
        %v1255 = vadd.f32 %v1166, %v1254
        %1256 = vmatmul.bf16.gmra.mxu0 %v749
        %v1257 = vpop.f32.mrf.mxu0
        %v1258 = vadd.f32 %v1169, %v1257
        %v1259 = vpop.f32.mrf.mxu0
        %v1260 = vadd.f32 %v1171, %v1259
        %1261 = vmatmul.bf16.gmra.mxu0 %v753
        %v1262 = vpop.f32.mrf.mxu0
        %v1263 = vadd.f32 %v1174, %v1262
        %v1264 = vpop.f32.mrf.mxu0
        %v1265 = vadd.f32 %v1176, %v1264
        %1266 = vmatmul.bf16.gmra.mxu0 %v757
        %v1267 = vpop.f32.mrf.mxu0
        %v1268 = vadd.f32 %v1179, %v1267
        %v1269 = vpop.f32.mrf.mxu0
        %v1270 = vadd.f32 %v1181, %v1269
        %1271 = vmatmul.bf16.gmra.mxu0 %v761
        %v1272 = vpop.f32.mrf.mxu0
        %v1273 = vadd.f32 %v1184, %v1272
        %v1274 = vpop.f32.mrf.mxu0
        %v1275 = vadd.f32 %v1186, %v1274
        %1276 = vmatmul.bf16.gmra.mxu0 %v765
        %v1277 = vpop.f32.mrf.mxu0
        %v1278 = vadd.f32 %v1189, %v1277
        %v1279 = vpop.f32.mrf.mxu0
        %v1280 = vadd.f32 %v1191, %v1279
        %1281 = vmatmul.bf16.gmra.mxu0 %v769
        %v1282 = vpop.f32.mrf.mxu0
        %v1283 = vadd.f32 %v1194, %v1282
        %v1284 = vpop.f32.mrf.mxu0
        %v1285 = vadd.f32 %v1196, %v1284
        %1286 = vmatmul.bf16.gmra.mxu0 %v773
        %v1287 = vpop.f32.mrf.mxu0
        %v1288 = vadd.f32 %v1199, %v1287
        %v1289 = vpop.f32.mrf.mxu0
        %v1290 = vadd.f32 %v1201, %v1289
        %1291 = vmatmul.bf16.gmra.mxu0 %v777
        %v1292 = vpop.f32.mrf.mxu0
        %v1293 = vadd.f32 %v1204, %v1292
        %v1294 = vpop.f32.mrf.mxu0
        %v1295 = vadd.f32 %v1206, %v1294
        %1296 = vmatmul.bf16.gmra.mxu0 %v781
        %v1297 = vpop.f32.mrf.mxu0
        %v1298 = vadd.f32 %v1209, %v1297
        %v1299 = vpop.f32.mrf.mxu0
        %v1300 = vadd.f32 %v1211, %v1299
        %1301 = vmatmul.bf16.gmra.mxu0 %v785
        %v1302 = vpop.f32.mrf.mxu0
        %v1303 = vadd.f32 %v1214, %v1302
        %v1304 = vpop.f32.mrf.mxu0
        %v1305 = vadd.f32 %v1216, %v1304
        %1306 = vmatmul.bf16.gmra.mxu0 %v789
        %v1307 = vpop.f32.mrf.mxu0
        %v1308 = vadd.f32 %v1219, %v1307
        %v1309 = vpop.f32.mrf.mxu0
        %v1310 = vadd.f32 %v1221, %v1309
        %1311 = vmatmul.bf16.gmra.mxu0 %v793
        %v1312 = vpop.f32.mrf.mxu0
        %v1313 = vadd.f32 %v1224, %v1312
        %v1314 = vpop.f32.mrf.mxu0
        %v1315 = vadd.f32 %v1226, %v1314
        %1316 = vmatmul.bf16.gmra.mxu0 %v797
        %v1317 = vpop.f32.mrf.mxu0
        %v1318 = vadd.f32 %v1229, %v1317
        %v1319 = vpop.f32.mrf.mxu0
        %v1320 = vadd.f32 %v1231, %v1319
        %1321 = vdwg.mxu0
        %1322 = vmatpush.bf16.msra.mxu0 %v1022
        %1323 = vmatpush.bf16.msra.mxu0 %v1021
        %1324 = vmatpush.bf16.msra.mxu0 %v1020
        %1325 = vmatpush.bf16.msra.mxu0 %v1019
        %1326 = vmatpush.bf16.msra.mxu0 %v1018
        %1327 = vmatpush.bf16.msra.mxu0 %v1017
        %1328 = vmatpush.bf16.msra.mxu0 %v1016
        %1329 = vmatpush.bf16.msra.mxu0 %v1015
        %1330 = vmatmul.bf16.gmra.mxu0 %v738
        %v1331 = vpop.f32.mrf.mxu0
        %v1332 = vadd.f32 %v1243, %v1331
        %v1333 = vpop.f32.mrf.mxu0
        %v1334 = vadd.f32 %v1245, %v1333
        %1335 = vmatmul.bf16.gmra.mxu0 %v742
        %v1336 = vpop.f32.mrf.mxu0
        %v1337 = vadd.f32 %v1248, %v1336
        %v1338 = vpop.f32.mrf.mxu0
        %v1339 = vadd.f32 %v1250, %v1338
        %1340 = vmatmul.bf16.gmra.mxu0 %v746
        %v1341 = vpop.f32.mrf.mxu0
        %v1342 = vadd.f32 %v1253, %v1341
        %v1343 = vpop.f32.mrf.mxu0
        %v1344 = vadd.f32 %v1255, %v1343
        %1345 = vmatmul.bf16.gmra.mxu0 %v750
        %v1346 = vpop.f32.mrf.mxu0
        %v1347 = vadd.f32 %v1258, %v1346
        %v1348 = vpop.f32.mrf.mxu0
        %v1349 = vadd.f32 %v1260, %v1348
        %1350 = vmatmul.bf16.gmra.mxu0 %v754
        %v1351 = vpop.f32.mrf.mxu0
        %v1352 = vadd.f32 %v1263, %v1351
        %v1353 = vpop.f32.mrf.mxu0
        %v1354 = vadd.f32 %v1265, %v1353
        %1355 = vmatmul.bf16.gmra.mxu0 %v758
        %v1356 = vpop.f32.mrf.mxu0
        %v1357 = vadd.f32 %v1268, %v1356
        %v1358 = vpop.f32.mrf.mxu0
        %v1359 = vadd.f32 %v1270, %v1358
        %1360 = vmatmul.bf16.gmra.mxu0 %v762
        %v1361 = vpop.f32.mrf.mxu0
        %v1362 = vadd.f32 %v1273, %v1361
        %v1363 = vpop.f32.mrf.mxu0
        %v1364 = vadd.f32 %v1275, %v1363
        %1365 = vmatmul.bf16.gmra.mxu0 %v766
        %v1366 = vpop.f32.mrf.mxu0
        %v1367 = vadd.f32 %v1278, %v1366
        %v1368 = vpop.f32.mrf.mxu0
        %v1369 = vadd.f32 %v1280, %v1368
        %1370 = vmatmul.bf16.gmra.mxu0 %v770
        %v1371 = vpop.f32.mrf.mxu0
        %v1372 = vadd.f32 %v1283, %v1371
        %v1373 = vpop.f32.mrf.mxu0
        %v1374 = vadd.f32 %v1285, %v1373
        %1375 = vmatmul.bf16.gmra.mxu0 %v774
        %v1376 = vpop.f32.mrf.mxu0
        %v1377 = vadd.f32 %v1288, %v1376
        %v1378 = vpop.f32.mrf.mxu0
        %v1379 = vadd.f32 %v1290, %v1378
        %1380 = vmatmul.bf16.gmra.mxu0 %v778
        %v1381 = vpop.f32.mrf.mxu0
        %v1382 = vadd.f32 %v1293, %v1381
        %v1383 = vpop.f32.mrf.mxu0
        %v1384 = vadd.f32 %v1295, %v1383
        %1385 = vmatmul.bf16.gmra.mxu0 %v782
        %v1386 = vpop.f32.mrf.mxu0
        %v1387 = vadd.f32 %v1298, %v1386
        %v1388 = vpop.f32.mrf.mxu0
        %v1389 = vadd.f32 %v1300, %v1388
        %1390 = vmatmul.bf16.gmra.mxu0 %v786
        %v1391 = vpop.f32.mrf.mxu0
        %v1392 = vadd.f32 %v1303, %v1391
        %v1393 = vpop.f32.mrf.mxu0
        %v1394 = vadd.f32 %v1305, %v1393
        %1395 = vmatmul.bf16.gmra.mxu0 %v790
        %v1396 = vpop.f32.mrf.mxu0
        %v1397 = vadd.f32 %v1308, %v1396
        %v1398 = vpop.f32.mrf.mxu0
        %v1399 = vadd.f32 %v1310, %v1398
        %1400 = vmatmul.bf16.gmra.mxu0 %v794
        %v1401 = vpop.f32.mrf.mxu0
        %v1402 = vadd.f32 %v1313, %v1401
        %v1403 = vpop.f32.mrf.mxu0
        %v1404 = vadd.f32 %v1315, %v1403
        %1405 = vmatmul.bf16.gmra.mxu0 %v798
        %v1406 = vpop.f32.mrf.mxu0
        %v1407 = vadd.f32 %v1318, %v1406
        %v1408 = vpop.f32.mrf.mxu0
        %v1409 = vadd.f32 %v1320, %v1408
        %1410 = vdwg.mxu0
        %v1411 = vadd.f32 %v383, %v1332
        %v1412 = vadd.f32 %v384, %v1334
        %v1413 = vadd.f32 %v385, %v1337
        %v1414 = vadd.f32 %v386, %v1339
        %v1415 = vadd.f32 %v387, %v1342
        %v1416 = vadd.f32 %v388, %v1344
        %v1417 = vadd.f32 %v389, %v1347
        %v1418 = vadd.f32 %v390, %v1349
        %v1419 = vadd.f32 %v391, %v1352
        %v1420 = vadd.f32 %v392, %v1354
        %v1421 = vadd.f32 %v393, %v1357
        %v1422 = vadd.f32 %v394, %v1359
        %v1423 = vadd.f32 %v395, %v1362
        %v1424 = vadd.f32 %v396, %v1364
        %v1425 = vadd.f32 %v397, %v1367
        %v1426 = vadd.f32 %v398, %v1369
        %v1427 = vadd.f32 %v399, %v1372
        %v1428 = vadd.f32 %v400, %v1374
        %v1429 = vadd.f32 %v401, %v1377
        %v1430 = vadd.f32 %v402, %v1379
        %v1431 = vadd.f32 %v403, %v1382
        %v1432 = vadd.f32 %v404, %v1384
        %v1433 = vadd.f32 %v405, %v1387
        %v1434 = vadd.f32 %v406, %v1389
        %v1435 = vadd.f32 %v407, %v1392
        %v1436 = vadd.f32 %v408, %v1394
        %v1437 = vadd.f32 %v409, %v1397
        %v1438 = vadd.f32 %v410, %v1399
        %v1439 = vadd.f32 %v411, %v1402
        %v1440 = vadd.f32 %v412, %v1404
        %v1441 = vadd.f32 %v413, %v1407
        %v1442 = vadd.f32 %v414, %v1409
        %1443 = vst [vmem:[#allocation2] sm:$0xff] %v1411
        %1444 = vst [vmem:[#allocation2 + $0x8] sm:$0xff] %v1412
        %1445 = vst [vmem:[#allocation2 + $0x10] sm:$0xff] %v1413
        %1446 = vst [vmem:[#allocation2 + $0x18] sm:$0xff] %v1414
        %1447 = vst [vmem:[#allocation2 + $0x20] sm:$0xff] %v1415
        %1448 = vst [vmem:[#allocation2 + $0x28] sm:$0xff] %v1416
        %1449 = vst [vmem:[#allocation2 + $0x30] sm:$0xff] %v1417
        %1450 = vst [vmem:[#allocation2 + $0x38] sm:$0xff] %v1418
        %1451 = vst [vmem:[#allocation2 + $0x40] sm:$0xff] %v1419
        %1452 = vst [vmem:[#allocation2 + $0x48] sm:$0xff] %v1420
        %1453 = vst [vmem:[#allocation2 + $0x50] sm:$0xff] %v1421
        %1454 = vst [vmem:[#allocation2 + $0x58] sm:$0xff] %v1422
        %1455 = vst [vmem:[#allocation2 + $0x60] sm:$0xff] %v1423
        %1456 = vst [vmem:[#allocation2 + $0x68] sm:$0xff] %v1424
        %1457 = vst [vmem:[#allocation2 + $0x70] sm:$0xff] %v1425
        %1458 = vst [vmem:[#allocation2 + $0x78] sm:$0xff] %v1426
        %1459 = vst [vmem:[#allocation2 + $0x80] sm:$0xff] %v1427
        %1460 = vst [vmem:[#allocation2 + $0x88] sm:$0xff] %v1428
        %1461 = vst [vmem:[#allocation2 + $0x90] sm:$0xff] %v1429
        %1462 = vst [vmem:[#allocation2 + $0x98] sm:$0xff] %v1430
        %1463 = vst [vmem:[#allocation2 + $0xa0] sm:$0xff] %v1431
        %1464 = vst [vmem:[#allocation2 + $0xa8] sm:$0xff] %v1432
        %1465 = vst [vmem:[#allocation2 + $0xb0] sm:$0xff] %v1433
        %1466 = vst [vmem:[#allocation2 + $0xb8] sm:$0xff] %v1434
        %1467 = vst [vmem:[#allocation2 + $0xc0] sm:$0xff] %v1435
        %1468 = vst [vmem:[#allocation2 + $0xc8] sm:$0xff] %v1436
        %1469 = vst [vmem:[#allocation2 + $0xd0] sm:$0xff] %v1437
        %1470 = vst [vmem:[#allocation2 + $0xd8] sm:$0xff] %v1438
        %1471 = vst [vmem:[#allocation2 + $0xe0] sm:$0xff] %v1439
        %1472 = vst [vmem:[#allocation2 + $0xe8] sm:$0xff] %v1440
        %1473 = vst [vmem:[#allocation2 + $0xf0] sm:$0xff] %v1441
        %1474 = vst [vmem:[#allocation2 + $0xf8] sm:$0xff] %v1442
        // Predicated region
        $region61: #{tpu_custom_call.1} parent=39 // pred_check
          %p1475 = pneg %p347
        $region62: #{tpu_custom_call.1} parent=39 // pred_check_branch
          %1477 = sbr.rel (%p1475) target = $region64
        $region63: #{tpu_custom_call.1} parent=39 // pred_region
          %v1478 = vld [vmem:[#allocation2] sm:$0xff]
          %v1479 = vld [vmem:[#allocation2 + $0x8] sm:$0xff]
          %v1480 = vld [vmem:[#allocation2 + $0x10] sm:$0xff]
          %v1481 = vld [vmem:[#allocation2 + $0x18] sm:$0xff]
          %v1482 = vld [vmem:[#allocation2 + $0x20] sm:$0xff]
          %v1483 = vld [vmem:[#allocation2 + $0x28] sm:$0xff]
          %v1484 = vld [vmem:[#allocation2 + $0x30] sm:$0xff]
          %v1485 = vld [vmem:[#allocation2 + $0x38] sm:$0xff]
          %v1486 = vld [vmem:[#allocation2 + $0x40] sm:$0xff]
          %v1487 = vld [vmem:[#allocation2 + $0x48] sm:$0xff]
          %v1488 = vld [vmem:[#allocation2 + $0x50] sm:$0xff]
          %v1489 = vld [vmem:[#allocation2 + $0x58] sm:$0xff]
          %v1490 = vld [vmem:[#allocation2 + $0x60] sm:$0xff]
          %v1491 = vld [vmem:[#allocation2 + $0x68] sm:$0xff]
          %v1492 = vld [vmem:[#allocation2 + $0x70] sm:$0xff]
          %v1493 = vld [vmem:[#allocation2 + $0x78] sm:$0xff]
          %v1494 = vld [vmem:[#allocation2 + $0x80] sm:$0xff]
          %v1495 = vld [vmem:[#allocation2 + $0x88] sm:$0xff]
          %v1496 = vld [vmem:[#allocation2 + $0x90] sm:$0xff]
          %v1497 = vld [vmem:[#allocation2 + $0x98] sm:$0xff]
          %v1498 = vld [vmem:[#allocation2 + $0xa0] sm:$0xff]
          %v1499 = vld [vmem:[#allocation2 + $0xa8] sm:$0xff]
          %v1500 = vld [vmem:[#allocation2 + $0xb0] sm:$0xff]
          %v1501 = vld [vmem:[#allocation2 + $0xb8] sm:$0xff]
          %v1502 = vld [vmem:[#allocation2 + $0xc0] sm:$0xff]
          %v1503 = vld [vmem:[#allocation2 + $0xc8] sm:$0xff]
          %v1504 = vld [vmem:[#allocation2 + $0xd0] sm:$0xff]
          %v1505 = vld [vmem:[#allocation2 + $0xd8] sm:$0xff]
          %v1506 = vld [vmem:[#allocation2 + $0xe0] sm:$0xff]
          %v1507 = vld [vmem:[#allocation2 + $0xe8] sm:$0xff]
          %v1508 = vld [vmem:[#allocation2 + $0xf0] sm:$0xff]
          %v1509 = vld [vmem:[#allocation2 + $0xf8] sm:$0xff]
          %v1510 = vpack.c.bf16 %v1478, %v1478
          %v1511 = vpack.c.bf16 %v1479, %v1479
          %v1512 = vpack.c.bf16 %v1480, %v1480
          %v1513 = vpack.c.bf16 %v1481, %v1481
          %v1514 = vpack.c.bf16 %v1482, %v1482
          %v1515 = vpack.c.bf16 %v1483, %v1483
          %v1516 = vpack.c.bf16 %v1484, %v1484
          %v1517 = vpack.c.bf16 %v1485, %v1485
          %v1518 = vpack.c.bf16 %v1486, %v1486
          %v1519 = vpack.c.bf16 %v1487, %v1487
          %v1520 = vpack.c.bf16 %v1488, %v1488
          %v1521 = vpack.c.bf16 %v1489, %v1489
          %v1522 = vpack.c.bf16 %v1490, %v1490
          %v1523 = vpack.c.bf16 %v1491, %v1491
          %v1524 = vpack.c.bf16 %v1492, %v1492
          %v1525 = vpack.c.bf16 %v1493, %v1493
          %v1526 = vpack.c.bf16 %v1494, %v1494
          %v1527 = vpack.c.bf16 %v1495, %v1495
          %v1528 = vpack.c.bf16 %v1496, %v1496
          %v1529 = vpack.c.bf16 %v1497, %v1497
          %v1530 = vpack.c.bf16 %v1498, %v1498
          %v1531 = vpack.c.bf16 %v1499, %v1499
          %v1532 = vpack.c.bf16 %v1500, %v1500
          %v1533 = vpack.c.bf16 %v1501, %v1501
          %v1534 = vpack.c.bf16 %v1502, %v1502
          %v1535 = vpack.c.bf16 %v1503, %v1503
          %v1536 = vpack.c.bf16 %v1504, %v1504
          %v1537 = vpack.c.bf16 %v1505, %v1505
          %v1538 = vpack.c.bf16 %v1506, %v1506
          %v1539 = vpack.c.bf16 %v1507, %v1507
          %v1540 = vpack.c.bf16 %v1508, %v1508
          %v1541 = vpack.c.bf16 %v1509, %v1509
          %v1542 = vld [vmem:[%s304] sm:$0xf]
          %v1543 = vld [vmem:[%s304 + $0x4] sm:$0xf]
          %v1544 = vld [vmem:[%s304 + $0x8] sm:$0xf]
          %v1545 = vld [vmem:[%s304 + $0xc] sm:$0xf]
          %v1546 = vld [vmem:[%s304 + $0x10] sm:$0xf]
          %v1547 = vld [vmem:[%s304 + $0x14] sm:$0xf]
          %v1548 = vld [vmem:[%s304 + $0x18] sm:$0xf]
          %v1549 = vld [vmem:[%s304 + $0x1c] sm:$0xf]
          %v1550 = vld [vmem:[%s304 + $0x20] sm:$0xf]
          %v1551 = vld [vmem:[%s304 + $0x24] sm:$0xf]
          %v1552 = vld [vmem:[%s304 + $0x28] sm:$0xf]
          %v1553 = vld [vmem:[%s304 + $0x2c] sm:$0xf]
          %v1554 = vld [vmem:[%s304 + $0x30] sm:$0xf]
          %v1555 = vld [vmem:[%s304 + $0x34] sm:$0xf]
          %v1556 = vld [vmem:[%s304 + $0x38] sm:$0xf]
          %v1557 = vld [vmem:[%s304 + $0x3c] sm:$0xf]
          %v1558 = vld [vmem:[%s304 + $0x40] sm:$0xf]
          %v1559 = vld [vmem:[%s304 + $0x44] sm:$0xf]
          %v1560 = vld [vmem:[%s304 + $0x48] sm:$0xf]
          %v1561 = vld [vmem:[%s304 + $0x4c] sm:$0xf]
          %v1562 = vld [vmem:[%s304 + $0x50] sm:$0xf]
          %v1563 = vld [vmem:[%s304 + $0x54] sm:$0xf]
          %v1564 = vld [vmem:[%s304 + $0x58] sm:$0xf]
          %v1565 = vld [vmem:[%s304 + $0x5c] sm:$0xf]
          %v1566 = vld [vmem:[%s304 + $0x60] sm:$0xf]
          %v1567 = vld [vmem:[%s304 + $0x64] sm:$0xf]
          %v1568 = vld [vmem:[%s304 + $0x68] sm:$0xf]
          %v1569 = vld [vmem:[%s304 + $0x6c] sm:$0xf]
          %v1570 = vld [vmem:[%s304 + $0x70] sm:$0xf]
          %v1571 = vld [vmem:[%s304 + $0x74] sm:$0xf]
          %v1572 = vld [vmem:[%s304 + $0x78] sm:$0xf]
          %v1573 = vld [vmem:[%s304 + $0x7c] sm:$0xf]
          %v1606 = vunpack.c.l.b16 %v1510
          %v1607 = vunpack.c.l.b16 %v1511
          %v1608 = vunpack.c.l.b16 %v1512
          %v1609 = vunpack.c.l.b16 %v1513
          %v1610 = vunpack.c.l.b16 %v1514
          %v1611 = vunpack.c.l.b16 %v1515
          %v1612 = vunpack.c.l.b16 %v1516
          %v1613 = vunpack.c.l.b16 %v1517
          %v1614 = vunpack.c.l.b16 %v1518
          %v1615 = vunpack.c.l.b16 %v1519
          %v1616 = vunpack.c.l.b16 %v1520
          %v1617 = vunpack.c.l.b16 %v1521
          %v1618 = vunpack.c.l.b16 %v1522
          %v1619 = vunpack.c.l.b16 %v1523
          %v1620 = vunpack.c.l.b16 %v1524
          %v1621 = vunpack.c.l.b16 %v1525
          %v1622 = vunpack.c.l.b16 %v1526
          %v1623 = vunpack.c.l.b16 %v1527
          %v1624 = vunpack.c.l.b16 %v1528
          %v1625 = vunpack.c.l.b16 %v1529
          %v1626 = vunpack.c.l.b16 %v1530
          %v1627 = vunpack.c.l.b16 %v1531
          %v1628 = vunpack.c.l.b16 %v1532
          %v1629 = vunpack.c.l.b16 %v1533
          %v1630 = vunpack.c.l.b16 %v1534
          %v1631 = vunpack.c.l.b16 %v1535
          %v1632 = vunpack.c.l.b16 %v1536
          %v1633 = vunpack.c.l.b16 %v1537
          %v1634 = vunpack.c.l.b16 %v1538
          %v1635 = vunpack.c.l.b16 %v1539
          %v1636 = vunpack.c.l.b16 %v1540
          %v1637 = vunpack.c.l.b16 %v1541
          %v1638 = vpack.c.b16 %v1607, %v1606
          %v1639 = vpack.c.b16 %v1609, %v1608
          %v1640 = vpack.c.b16 %v1611, %v1610
          %v1641 = vpack.c.b16 %v1613, %v1612
          %v1642 = vpack.c.b16 %v1615, %v1614
          %v1643 = vpack.c.b16 %v1617, %v1616
          %v1644 = vpack.c.b16 %v1619, %v1618
          %v1645 = vpack.c.b16 %v1621, %v1620
          %v1646 = vpack.c.b16 %v1623, %v1622
          %v1647 = vpack.c.b16 %v1625, %v1624
          %v1648 = vpack.c.b16 %v1627, %v1626
          %v1649 = vpack.c.b16 %v1629, %v1628
          %v1650 = vpack.c.b16 %v1631, %v1630
          %v1651 = vpack.c.b16 %v1633, %v1632
          %v1652 = vpack.c.b16 %v1635, %v1634
          %v1653 = vpack.c.b16 %v1637, %v1636
          %v1702 = vunpack.c.l.b16 %v1542
          %v1703 = vunpack.c.l.b16 %v1543
          %v1704 = vunpack.c.l.b16 %v1544
          %v1705 = vunpack.c.l.b16 %v1545
          %v1706 = vunpack.c.l.b16 %v1546
          %v1707 = vunpack.c.l.b16 %v1547
          %v1708 = vunpack.c.l.b16 %v1548
          %v1709 = vunpack.c.l.b16 %v1549
          %v1710 = vunpack.c.l.b16 %v1550
          %v1711 = vunpack.c.l.b16 %v1551
          %v1712 = vunpack.c.l.b16 %v1552
          %v1713 = vunpack.c.l.b16 %v1553
          %v1714 = vunpack.c.l.b16 %v1554
          %v1715 = vunpack.c.l.b16 %v1555
          %v1716 = vunpack.c.l.b16 %v1556
          %v1717 = vunpack.c.l.b16 %v1557
          %v1718 = vunpack.c.l.b16 %v1558
          %v1719 = vunpack.c.l.b16 %v1559
          %v1720 = vunpack.c.l.b16 %v1560
          %v1721 = vunpack.c.l.b16 %v1561
          %v1722 = vunpack.c.l.b16 %v1562
          %v1723 = vunpack.c.l.b16 %v1563
          %v1724 = vunpack.c.l.b16 %v1564
          %v1725 = vunpack.c.l.b16 %v1565
          %v1726 = vunpack.c.l.b16 %v1566
          %v1727 = vunpack.c.l.b16 %v1567
          %v1728 = vunpack.c.l.b16 %v1568
          %v1729 = vunpack.c.l.b16 %v1569
          %v1730 = vunpack.c.l.b16 %v1570
          %v1731 = vunpack.c.l.b16 %v1571
          %v1732 = vunpack.c.l.b16 %v1572
          %v1733 = vunpack.c.l.b16 %v1573
          %v1734 = vpack.c.b16 %v1703, %v1702
          %v1735 = vpack.c.b16 %v1705, %v1704
          %v1736 = vpack.c.b16 %v1707, %v1706
          %v1737 = vpack.c.b16 %v1709, %v1708
          %v1738 = vpack.c.b16 %v1711, %v1710
          %v1739 = vpack.c.b16 %v1713, %v1712
          %v1740 = vpack.c.b16 %v1715, %v1714
          %v1741 = vpack.c.b16 %v1717, %v1716
          %v1742 = vpack.c.b16 %v1719, %v1718
          %v1743 = vpack.c.b16 %v1721, %v1720
          %v1744 = vpack.c.b16 %v1723, %v1722
          %v1745 = vpack.c.b16 %v1725, %v1724
          %v1746 = vpack.c.b16 %v1727, %v1726
          %v1747 = vpack.c.b16 %v1729, %v1728
          %v1748 = vpack.c.b16 %v1731, %v1730
          %v1749 = vpack.c.b16 %v1733, %v1732
          %v1766 = vld [vmem:[#allocation9] sm:$0xf]
          %v1767 = vld [vmem:[#allocation9 + $0x4] sm:$0xf]
          %v1768 = vld [vmem:[#allocation9 + $0x8] sm:$0xf]
          %v1769 = vld [vmem:[#allocation9 + $0xc] sm:$0xf]
          %v1770 = vld [vmem:[#allocation9 + $0x10] sm:$0xf]
          %v1771 = vld [vmem:[#allocation9 + $0x14] sm:$0xf]
          %v1772 = vld [vmem:[#allocation9 + $0x18] sm:$0xf]
          %v1773 = vld [vmem:[#allocation9 + $0x1c] sm:$0xf]
          %v1774 = vld [vmem:[#allocation9 + $0x20] sm:$0xf]
          %v1775 = vld [vmem:[#allocation9 + $0x24] sm:$0xf]
          %v1776 = vld [vmem:[#allocation9 + $0x28] sm:$0xf]
          %v1777 = vld [vmem:[#allocation9 + $0x2c] sm:$0xf]
          %v1778 = vld [vmem:[#allocation9 + $0x30] sm:$0xf]
          %v1779 = vld [vmem:[#allocation9 + $0x34] sm:$0xf]
          %v1780 = vld [vmem:[#allocation9 + $0x38] sm:$0xf]
          %v1781 = vld [vmem:[#allocation9 + $0x3c] sm:$0xf]
          %v1782 = vld [vmem:[#allocation9 + $0x40] sm:$0xf]
          %v1783 = vld [vmem:[#allocation9 + $0x44] sm:$0xf]
          %v1784 = vld [vmem:[#allocation9 + $0x48] sm:$0xf]
          %v1785 = vld [vmem:[#allocation9 + $0x4c] sm:$0xf]
          %v1786 = vld [vmem:[#allocation9 + $0x50] sm:$0xf]
          %v1787 = vld [vmem:[#allocation9 + $0x54] sm:$0xf]
          %v1788 = vld [vmem:[#allocation9 + $0x58] sm:$0xf]
          %v1789 = vld [vmem:[#allocation9 + $0x5c] sm:$0xf]
          %v1790 = vld [vmem:[#allocation9 + $0x60] sm:$0xf]
          %v1791 = vld [vmem:[#allocation9 + $0x64] sm:$0xf]
          %v1792 = vld [vmem:[#allocation9 + $0x68] sm:$0xf]
          %v1793 = vld [vmem:[#allocation9 + $0x6c] sm:$0xf]
          %v1794 = vld [vmem:[#allocation9 + $0x70] sm:$0xf]
          %v1795 = vld [vmem:[#allocation9 + $0x74] sm:$0xf]
          %v1796 = vld [vmem:[#allocation9 + $0x78] sm:$0xf]
          %v1797 = vld [vmem:[#allocation9 + $0x7c] sm:$0xf]
          %v1798 = vld [vmem:[%s4] sm:$0x1]
          %v1800 = vperm.slane %v1798, 0
          %v1834 = vunpack.c.l.b16 %v1766
          %v1835 = vunpack.c.l.b16 %v1767
          %v1836 = vunpack.c.l.b16 %v1768
          %v1837 = vunpack.c.l.b16 %v1769
          %v1838 = vunpack.c.l.b16 %v1770
          %v1839 = vunpack.c.l.b16 %v1771
          %v1840 = vunpack.c.l.b16 %v1772
          %v1841 = vunpack.c.l.b16 %v1773
          %v1842 = vunpack.c.l.b16 %v1774
          %v1843 = vunpack.c.l.b16 %v1775
          %v1844 = vunpack.c.l.b16 %v1776
          %v1845 = vunpack.c.l.b16 %v1777
          %v1846 = vunpack.c.l.b16 %v1778
          %v1847 = vunpack.c.l.b16 %v1779
          %v1848 = vunpack.c.l.b16 %v1780
          %v1849 = vunpack.c.l.b16 %v1781
          %v1850 = vunpack.c.l.b16 %v1782
          %v1851 = vunpack.c.l.b16 %v1783
          %v1852 = vunpack.c.l.b16 %v1784
          %v1853 = vunpack.c.l.b16 %v1785
          %v1854 = vunpack.c.l.b16 %v1786
          %v1855 = vunpack.c.l.b16 %v1787
          %v1856 = vunpack.c.l.b16 %v1788
          %v1857 = vunpack.c.l.b16 %v1789
          %v1858 = vunpack.c.l.b16 %v1790
          %v1859 = vunpack.c.l.b16 %v1791
          %v1860 = vunpack.c.l.b16 %v1792
          %v1861 = vunpack.c.l.b16 %v1793
          %v1862 = vunpack.c.l.b16 %v1794
          %v1863 = vunpack.c.l.b16 %v1795
          %v1864 = vunpack.c.l.b16 %v1796
          %v1865 = vunpack.c.l.b16 %v1797
          %v1866 = vpack.c.b16 %v1835, %v1834
          %v1867 = vpack.c.b16 %v1837, %v1836
          %v1868 = vpack.c.b16 %v1839, %v1838
          %v1869 = vpack.c.b16 %v1841, %v1840
          %v1870 = vpack.c.b16 %v1843, %v1842
          %v1871 = vpack.c.b16 %v1845, %v1844
          %v1872 = vpack.c.b16 %v1847, %v1846
          %v1873 = vpack.c.b16 %v1849, %v1848
          %v1874 = vpack.c.b16 %v1851, %v1850
          %v1875 = vpack.c.b16 %v1853, %v1852
          %v1876 = vpack.c.b16 %v1855, %v1854
          %v1877 = vpack.c.b16 %v1857, %v1856
          %v1878 = vpack.c.b16 %v1859, %v1858
          %v1879 = vpack.c.b16 %v1861, %v1860
          %v1880 = vpack.c.b16 %v1863, %v1862
          %v1881 = vpack.c.b16 %v1865, %v1864
          %1898 = vmatpush.bf16.msra.mxu0 %v1873
          %1899 = vmatpush.bf16.msra.mxu0 %v1872
          %1900 = vmatpush.bf16.msra.mxu0 %v1871
          %1901 = vmatpush.bf16.msra.mxu0 %v1870
          %1902 = vmatpush.bf16.msra.mxu0 %v1869
          %1903 = vmatpush.bf16.msra.mxu0 %v1868
          %1904 = vmatpush.bf16.msra.mxu0 %v1867
          %1905 = vmatpush.bf16.msra.mxu0 %v1866
          %1906 = vmatmul.bf16.gmra.mxu0 %v1638
          %v1907 = vpop.f32.mrf.mxu0
          %v1908 = vadd.f32 %v1800, %v1907
          %v1909 = vpop.f32.mrf.mxu0
          %v1910 = vadd.f32 %v1800, %v1909
          %1911 = vmatmul.bf16.gmra.mxu0 %v1639
          %v1912 = vpop.f32.mrf.mxu0
          %v1913 = vadd.f32 %v1800, %v1912
          %v1914 = vpop.f32.mrf.mxu0
          %v1915 = vadd.f32 %v1800, %v1914
          %1916 = vmatmul.bf16.gmra.mxu0 %v1640
          %v1917 = vpop.f32.mrf.mxu0
          %v1918 = vadd.f32 %v1800, %v1917
          %v1919 = vpop.f32.mrf.mxu0
          %v1920 = vadd.f32 %v1800, %v1919
          %1921 = vmatmul.bf16.gmra.mxu0 %v1641
          %v1922 = vpop.f32.mrf.mxu0
          %v1923 = vadd.f32 %v1800, %v1922
          %v1924 = vpop.f32.mrf.mxu0
          %v1925 = vadd.f32 %v1800, %v1924
          %1926 = vmatmul.bf16.gmra.mxu0 %v1642
          %v1927 = vpop.f32.mrf.mxu0
          %v1928 = vadd.f32 %v1800, %v1927
          %v1929 = vpop.f32.mrf.mxu0
          %v1930 = vadd.f32 %v1800, %v1929
          %1931 = vmatmul.bf16.gmra.mxu0 %v1643
          %v1932 = vpop.f32.mrf.mxu0
          %v1933 = vadd.f32 %v1800, %v1932
          %v1934 = vpop.f32.mrf.mxu0
          %v1935 = vadd.f32 %v1800, %v1934
          %1936 = vmatmul.bf16.gmra.mxu0 %v1644
          %v1937 = vpop.f32.mrf.mxu0
          %v1938 = vadd.f32 %v1800, %v1937
          %v1939 = vpop.f32.mrf.mxu0
          %v1940 = vadd.f32 %v1800, %v1939
          %1941 = vmatmul.bf16.gmra.mxu0 %v1645
          %v1942 = vpop.f32.mrf.mxu0
          %v1943 = vadd.f32 %v1800, %v1942
          %v1944 = vpop.f32.mrf.mxu0
          %v1945 = vadd.f32 %v1800, %v1944
          %1946 = vmatmul.bf16.gmra.mxu0 %v1646
          %v1947 = vpop.f32.mrf.mxu0
          %v1948 = vadd.f32 %v1800, %v1947
          %v1949 = vpop.f32.mrf.mxu0
          %v1950 = vadd.f32 %v1800, %v1949
          %1951 = vmatmul.bf16.gmra.mxu0 %v1647
          %v1952 = vpop.f32.mrf.mxu0
          %v1953 = vadd.f32 %v1800, %v1952
          %v1954 = vpop.f32.mrf.mxu0
          %v1955 = vadd.f32 %v1800, %v1954
          %1956 = vmatmul.bf16.gmra.mxu0 %v1648
          %v1957 = vpop.f32.mrf.mxu0
          %v1958 = vadd.f32 %v1800, %v1957
          %v1959 = vpop.f32.mrf.mxu0
          %v1960 = vadd.f32 %v1800, %v1959
          %1961 = vmatmul.bf16.gmra.mxu0 %v1649
          %v1962 = vpop.f32.mrf.mxu0
          %v1963 = vadd.f32 %v1800, %v1962
          %v1964 = vpop.f32.mrf.mxu0
          %v1965 = vadd.f32 %v1800, %v1964
          %1966 = vmatmul.bf16.gmra.mxu0 %v1650
          %v1967 = vpop.f32.mrf.mxu0
          %v1968 = vadd.f32 %v1800, %v1967
          %v1969 = vpop.f32.mrf.mxu0
          %v1970 = vadd.f32 %v1800, %v1969
          %1971 = vmatmul.bf16.gmra.mxu0 %v1651
          %v1972 = vpop.f32.mrf.mxu0
          %v1973 = vadd.f32 %v1800, %v1972
          %v1974 = vpop.f32.mrf.mxu0
          %v1975 = vadd.f32 %v1800, %v1974
          %1976 = vmatmul.bf16.gmra.mxu0 %v1652
          %v1977 = vpop.f32.mrf.mxu0
          %v1978 = vadd.f32 %v1800, %v1977
          %v1979 = vpop.f32.mrf.mxu0
          %v1980 = vadd.f32 %v1800, %v1979
          %1981 = vmatmul.bf16.gmra.mxu0 %v1653
          %v1982 = vpop.f32.mrf.mxu0
          %v1983 = vadd.f32 %v1800, %v1982
          %v1984 = vpop.f32.mrf.mxu0
          %v1985 = vadd.f32 %v1800, %v1984
          %1986 = vdwg.mxu0
          %1987 = vmatpush.bf16.msra.mxu0 %v1881
          %1988 = vmatpush.bf16.msra.mxu0 %v1880
          %1989 = vmatpush.bf16.msra.mxu0 %v1879
          %1990 = vmatpush.bf16.msra.mxu0 %v1878
          %1991 = vmatpush.bf16.msra.mxu0 %v1877
          %1992 = vmatpush.bf16.msra.mxu0 %v1876
          %1993 = vmatpush.bf16.msra.mxu0 %v1875
          %1994 = vmatpush.bf16.msra.mxu0 %v1874
          %1995 = vmatmul.bf16.gmra.mxu0 %v1734
          %v1996 = vpop.f32.mrf.mxu0
          %v1997 = vadd.f32 %v1908, %v1996
          %v1998 = vpop.f32.mrf.mxu0
          %v1999 = vadd.f32 %v1910, %v1998
          %2000 = vmatmul.bf16.gmra.mxu0 %v1735
          %v2001 = vpop.f32.mrf.mxu0
          %v2002 = vadd.f32 %v1913, %v2001
          %v2003 = vpop.f32.mrf.mxu0
          %v2004 = vadd.f32 %v1915, %v2003
          %2005 = vmatmul.bf16.gmra.mxu0 %v1736
          %v2006 = vpop.f32.mrf.mxu0
          %v2007 = vadd.f32 %v1918, %v2006
          %v2008 = vpop.f32.mrf.mxu0
          %v2009 = vadd.f32 %v1920, %v2008
          %2010 = vmatmul.bf16.gmra.mxu0 %v1737
          %v2011 = vpop.f32.mrf.mxu0
          %v2012 = vadd.f32 %v1923, %v2011
          %v2013 = vpop.f32.mrf.mxu0
          %v2014 = vadd.f32 %v1925, %v2013
          %2015 = vmatmul.bf16.gmra.mxu0 %v1738
          %v2016 = vpop.f32.mrf.mxu0
          %v2017 = vadd.f32 %v1928, %v2016
          %v2018 = vpop.f32.mrf.mxu0
          %v2019 = vadd.f32 %v1930, %v2018
          %2020 = vmatmul.bf16.gmra.mxu0 %v1739
          %v2021 = vpop.f32.mrf.mxu0
          %v2022 = vadd.f32 %v1933, %v2021
          %v2023 = vpop.f32.mrf.mxu0
          %v2024 = vadd.f32 %v1935, %v2023
          %2025 = vmatmul.bf16.gmra.mxu0 %v1740
          %v2026 = vpop.f32.mrf.mxu0
          %v2027 = vadd.f32 %v1938, %v2026
          %v2028 = vpop.f32.mrf.mxu0
          %v2029 = vadd.f32 %v1940, %v2028
          %2030 = vmatmul.bf16.gmra.mxu0 %v1741
          %v2031 = vpop.f32.mrf.mxu0
          %v2032 = vadd.f32 %v1943, %v2031
          %v2033 = vpop.f32.mrf.mxu0
          %v2034 = vadd.f32 %v1945, %v2033
          %2035 = vmatmul.bf16.gmra.mxu0 %v1742
          %v2036 = vpop.f32.mrf.mxu0
          %v2037 = vadd.f32 %v1948, %v2036
          %v2038 = vpop.f32.mrf.mxu0
          %v2039 = vadd.f32 %v1950, %v2038
          %2040 = vmatmul.bf16.gmra.mxu0 %v1743
          %v2041 = vpop.f32.mrf.mxu0
          %v2042 = vadd.f32 %v1953, %v2041
          %v2043 = vpop.f32.mrf.mxu0
          %v2044 = vadd.f32 %v1955, %v2043
          %2045 = vmatmul.bf16.gmra.mxu0 %v1744
          %v2046 = vpop.f32.mrf.mxu0
          %v2047 = vadd.f32 %v1958, %v2046
          %v2048 = vpop.f32.mrf.mxu0
          %v2049 = vadd.f32 %v1960, %v2048
          %2050 = vmatmul.bf16.gmra.mxu0 %v1745
          %v2051 = vpop.f32.mrf.mxu0
          %v2052 = vadd.f32 %v1963, %v2051
          %v2053 = vpop.f32.mrf.mxu0
          %v2054 = vadd.f32 %v1965, %v2053
          %2055 = vmatmul.bf16.gmra.mxu0 %v1746
          %v2056 = vpop.f32.mrf.mxu0
          %v2057 = vadd.f32 %v1968, %v2056
          %v2058 = vpop.f32.mrf.mxu0
          %v2059 = vadd.f32 %v1970, %v2058
          %2060 = vmatmul.bf16.gmra.mxu0 %v1747
          %v2061 = vpop.f32.mrf.mxu0
          %v2062 = vadd.f32 %v1973, %v2061
          %v2063 = vpop.f32.mrf.mxu0
          %v2064 = vadd.f32 %v1975, %v2063
          %2065 = vmatmul.bf16.gmra.mxu0 %v1748
          %v2066 = vpop.f32.mrf.mxu0
          %v2067 = vadd.f32 %v1978, %v2066
          %v2068 = vpop.f32.mrf.mxu0
          %v2069 = vadd.f32 %v1980, %v2068
          %2070 = vmatmul.bf16.gmra.mxu0 %v1749
          %v2071 = vpop.f32.mrf.mxu0
          %v2072 = vadd.f32 %v1983, %v2071
          %v2073 = vpop.f32.mrf.mxu0
          %v2074 = vadd.f32 %v1985, %v2073
          %2075 = vdwg.mxu0
          %v2076 = vmax.f32 %v1997, 0.0
          %v2077 = vmax.f32 %v1999, 0.0
          %v2078 = vmax.f32 %v2002, 0.0
          %v2079 = vmax.f32 %v2004, 0.0
          %v2080 = vmax.f32 %v2007, 0.0
          %v2081 = vmax.f32 %v2009, 0.0
          %v2082 = vmax.f32 %v2012, 0.0
          %v2083 = vmax.f32 %v2014, 0.0
          %v2084 = vmax.f32 %v2017, 0.0
          %v2085 = vmax.f32 %v2019, 0.0
          %v2086 = vmax.f32 %v2022, 0.0
          %v2087 = vmax.f32 %v2024, 0.0
          %v2088 = vmax.f32 %v2027, 0.0
          %v2089 = vmax.f32 %v2029, 0.0
          %v2090 = vmax.f32 %v2032, 0.0
          %v2091 = vmax.f32 %v2034, 0.0
          %v2092 = vmax.f32 %v2037, 0.0
          %v2093 = vmax.f32 %v2039, 0.0
          %v2094 = vmax.f32 %v2042, 0.0
          %v2095 = vmax.f32 %v2044, 0.0
          %v2096 = vmax.f32 %v2047, 0.0
          %v2097 = vmax.f32 %v2049, 0.0
          %v2098 = vmax.f32 %v2052, 0.0
          %v2099 = vmax.f32 %v2054, 0.0
          %v2100 = vmax.f32 %v2057, 0.0
          %v2101 = vmax.f32 %v2059, 0.0
          %v2102 = vmax.f32 %v2062, 0.0
          %v2103 = vmax.f32 %v2064, 0.0
          %v2104 = vmax.f32 %v2067, 0.0
          %v2105 = vmax.f32 %v2069, 0.0
          %v2106 = vmax.f32 %v2072, 0.0
          %v2107 = vmax.f32 %v2074, 0.0
          %2108 = vst [vmem:[%s341] sm:$0xff] %v2076
          %2109 = vst [vmem:[%s341 + $0x8] sm:$0xff] %v2077
          %2110 = vst [vmem:[%s341 + $0x10] sm:$0xff] %v2078
          %2111 = vst [vmem:[%s341 + $0x18] sm:$0xff] %v2079
          %2112 = vst [vmem:[%s341 + $0x20] sm:$0xff] %v2080
          %2113 = vst [vmem:[%s341 + $0x28] sm:$0xff] %v2081
          %2114 = vst [vmem:[%s341 + $0x30] sm:$0xff] %v2082
          %2115 = vst [vmem:[%s341 + $0x38] sm:$0xff] %v2083
          %2116 = vst [vmem:[%s341 + $0x40] sm:$0xff] %v2084
          %2117 = vst [vmem:[%s341 + $0x48] sm:$0xff] %v2085
          %2118 = vst [vmem:[%s341 + $0x50] sm:$0xff] %v2086
          %2119 = vst [vmem:[%s341 + $0x58] sm:$0xff] %v2087
          %2120 = vst [vmem:[%s341 + $0x60] sm:$0xff] %v2088
          %2121 = vst [vmem:[%s341 + $0x68] sm:$0xff] %v2089
          %2122 = vst [vmem:[%s341 + $0x70] sm:$0xff] %v2090
          %2123 = vst [vmem:[%s341 + $0x78] sm:$0xff] %v2091
          %2124 = vst [vmem:[%s341 + $0x80] sm:$0xff] %v2092
          %2125 = vst [vmem:[%s341 + $0x88] sm:$0xff] %v2093
          %2126 = vst [vmem:[%s341 + $0x90] sm:$0xff] %v2094
          %2127 = vst [vmem:[%s341 + $0x98] sm:$0xff] %v2095
          %2128 = vst [vmem:[%s341 + $0xa0] sm:$0xff] %v2096
          %2129 = vst [vmem:[%s341 + $0xa8] sm:$0xff] %v2097
          %2130 = vst [vmem:[%s341 + $0xb0] sm:$0xff] %v2098
          %2131 = vst [vmem:[%s341 + $0xb8] sm:$0xff] %v2099
          %2132 = vst [vmem:[%s341 + $0xc0] sm:$0xff] %v2100
          %2133 = vst [vmem:[%s341 + $0xc8] sm:$0xff] %v2101
          %2134 = vst [vmem:[%s341 + $0xd0] sm:$0xff] %v2102
          %2135 = vst [vmem:[%s341 + $0xd8] sm:$0xff] %v2103
          %2136 = vst [vmem:[%s341 + $0xe0] sm:$0xff] %v2104
          %2137 = vst [vmem:[%s341 + $0xe8] sm:$0xff] %v2105
          %2138 = vst [vmem:[%s341 + $0xf0] sm:$0xff] %v2106
          %2139 = vst [vmem:[%s341 + $0xf8] sm:$0xff] %v2107
        $region64: #{tpu_custom_call.1} parent=39 // pred_fallthru
          _
        %s2140 = sand.u32 %s165, 1
        %s2141 = scalar_lea.sflag [#allocation5], %s2140
        %s2142 = sand.u32 %s165, 1
        %s2143 = smul.addr %s2142, 256
        %s2144 = scalar_lea.vmem [#allocation10], %s2143
        // Predicated region
        $region65: #{tpu_custom_call.1} parent=39 // pred_check
          %p2145 = pneg %p175
        $region66: #{tpu_custom_call.1} parent=39 // pred_check_branch
          %2147 = sbr.rel (%p2145) target = $region68
        $region67: #{tpu_custom_call.1} parent=39 // pred_region
          %s2148 = smul.u32 32, %s27
          %2150 = vsyncadd %s2141, 0
          %s2151 = smul.addr %s2148, 8
          %s2152 = scalar_lea.hbm %s5, %s2151
          %s2153 = sshll.u32 %s2144, 4
          %s2154 = int_to_ptr.vmem [resolvable:$true] %s2153
          %s2155 = sshll.u32 %s2152, 4
          %s2156 = int_to_ptr.hbm [resolvable:$true] %s2155
          %2161 = dma.vmem_to_hbm [thread:$0]  %s2154, 4096, %s2156, %s2141, 128, 128, 8
        $region68: #{tpu_custom_call.1} parent=39 // pred_fallthru
          _
      $region40: #{tpu_custom_call.1} parent=5 // pred_fallthru
        _
      %p2162 = scmp.le.s32.totalorder 2, %s18
      // Predicated region
      $region69: #{tpu_custom_call.1} parent=5 // pred_check
        %p2163 = pneg %p2162
      $region70: #{tpu_custom_call.1} parent=5 // pred_check_branch
        %2165 = sbr.rel (%p2163) target = $region72
      $region71: #{tpu_custom_call.1} parent=5 // pred_region
        %s2166 = ssub.s32 %s18, 2
        // Predicated region
        $region73: #{tpu_custom_call.1} parent=71 // pred_check
          %p2167 = pneg %p181
        $region74: #{tpu_custom_call.1} parent=71 // pred_check_branch
          %2169 = sbr.rel (%p2167) target = $region76
        $region75: #{tpu_custom_call.1} parent=71 // pred_region
          %s2170 = sand.u32 %s166, 1
          %s2171 = scalar_lea.sflag [#allocation5], %s2170
          %s2172 = sand.u32 %s166, 1
          %s2173 = smul.addr %s2172, 256
          %s2174 = scalar_lea.vmem [#allocation10], %s2173
          %2176 = dma.done %s2171, 4096
        $region76: #{tpu_custom_call.1} parent=71 // pred_fallthru
          _
      $region72: #{tpu_custom_call.1} parent=5 // pred_fallthru
        _
    $region6: #{tpu_custom_call.1} parent=1 // loop_footer
      %s22 = sadd.s32 1, %s18
    $region7: #{tpu_custom_call.1} parent=1 // loop_footer_branch
      %17 = sbr.rel target = $region3
    $region8: #{tpu_custom_call.1} parent=1 // loop_exit
      _
    %2177 = vsyncpa [#allocation4], 1
    %s2178 = scalar_lea.sflag [#allocation4], 1
    %2179 = vsyncpa %s2178, 1
    %2180 = vsyncpa [#allocation7], 1
    %2181 = vsyncpa [#allocation5], 1
    %s2182 = scalar_lea.sflag [#allocation5], 1
    %2183 = vsyncpa %s2182, 1

</llo_original>
